<compile_context>
chip_gen: v5e
topology: v5e:2x2
jax: 0.10.0
libtpu: 0.0.40
codegen_flags: <defaults>
</compile_context>

<pallas_src>
import functools

import jax
import jax.numpy as jnp
from jax.experimental import pallas as pl
from jax.experimental.pallas import tpu as pltpu


def _round_up(x, m):
    return (x + m - 1) // m * m


# ---------------------------------------------------------------------------
# Fused kernel: conv(all filter sizes) + maxpool + bias + ReLU + FC, one batch tile.
#   emb_ref   : (TB, L, D_PAD)            bf16  embedding tile
#   w_all_ref : (n_taps, D_PAD, F_PAD)    bf16  per-(filter, tap) conv weight blocks
#   conv_b_ref: (n_fs, F_PAD)             f32   conv biases (zero in padded lanes)
#   fc_w_ref  : (n_fs * F_PAD, C_PAD)     bf16  FC weights (zero rows/cols for padding)
#   fc_b_ref  : (1, C_PAD)                f32
#   o_ref     : (TB, C_PAD)               f32   padded logits
# ---------------------------------------------------------------------------
def _fused_cnn_kernel(emb_ref, w_all_ref, conv_b_ref, fc_w_ref, fc_b_ref, o_ref,
                      *, filter_sizes):
    x = emb_ref[...]                                    # (TB, L, D_PAD) bf16
    _, seq_len, _ = x.shape
    conv_b = conv_b_ref[...]                            # (n_fs, F_PAD) f32

    pooled_parts = []
    tap = 0
    for fi, f in enumerate(filter_sizes):
        lout = seq_len - f + 1
        # TODO(synk): on v7x the per-tap partials could accumulate in the MRB via
        # pltpu.matmul_push_rhs / matmul_acc_lhs / matmul_pop; the f32-accumulator form
        # below is the right choice for v5e/v6e (FIFO MRF) and is kept for portability.
        acc = None
        for t in range(f):
            lhs = x[:, t:t + lout, :]                   # (TB, lout, D_PAD) bf16
            part = jax.lax.dot_general(
                lhs, w_all_ref[tap], (((2,), (0,)), ((), ())),
                preferred_element_type=jnp.float32)     # (TB, lout, F_PAD) f32
            acc = part if acc is None else acc + part
            tap += 1
        # max_pool1d over the whole time axis; bias-add and ReLU commute exactly with
        # the time max (bias is constant per channel, ReLU is monotone), so apply them
        # post-pool on (TB, F_PAD) instead of (TB, lout, F_PAD).
        pooled = jnp.maximum(jnp.max(acc, axis=1) + conv_b[fi:fi + 1, :], 0.0)
        pooled_parts.append(pooled.astype(jnp.bfloat16))

    # Vreg-aligned lane concat at offsets 0/128/256 -> single MXU contraction (K = 384).
    feat = jnp.concatenate(pooled_parts, axis=1)        # (TB, n_fs * F_PAD) bf16
    o_ref[...] = jnp.dot(feat, fc_w_ref[...],
                         preferred_element_type=jnp.float32) + fc_b_ref[...]


# ---------------------------------------------------------------------------
# Tiling / VMEM budgeting (per-generation).
# ---------------------------------------------------------------------------
def _vmem_budget_bytes():
    # v5e/v6e have 128 MiB VMEM, v7x 64 MiB.  Query when possible; otherwise assume the
    # smallest (v7x) and keep headroom.
    try:
        cap = int(pltpu.get_tpu_info().vmem_capacity_bytes)
    except Exception:
        cap = 64 * 1024 * 1024
    return min(int(cap * 0.8), 100 * 1024 * 1024)


def _choose_tile_b(batch, seq_len, d_pad, f_pad, c_pad, n_fs, n_taps, vmem_limit):
    # Resident weights (counted double-buffered even though index_maps are constant).
    weight_bytes = 2 * (n_taps * d_pad * f_pad * 2      # w_all  bf16
                        + n_fs * f_pad * c_pad * 2      # fc_w   bf16
                        + n_fs * f_pad * 4 + c_pad * 4)  # biases f32
    # Per-batch-row working set: emb double buffer + live bf16 tile, one f32 tap
    # accumulator + in-flight partial (+ slack), pooled features, f32 output buffers.
    per_row = (2 * seq_len * d_pad * 2
               + seq_len * d_pad * 2
               + 3 * seq_len * f_pad * 4
               + n_fs * f_pad * 4
               + 2 * c_pad * 4)
    budget = max(vmem_limit // 2 - weight_bytes, per_row * 8)
    tile_cap = max(8, budget // per_row // 8 * 8)
    # Biggest tile that fits the budget (fills the MXU M dim: tile_b * L >> 256),
    # capped so we never pad a small batch beyond one tile's worth of waste.
    tile_b = max(8, min(tile_cap, 256))
    tile_b = min(tile_b, _round_up(batch, 8))
    # v7x megacore: keep at least 2 grid steps when the batch allows it.
    b_pad = _round_up(batch, tile_b)
    if b_pad // tile_b < 2 and b_pad >= 16:
        tile_b = max(8, (b_pad // 2) // 8 * 8)
    return tile_b


# ---------------------------------------------------------------------------
# Forward pass: embedding gather (XLA glue) + one fused pallas_call.
# ---------------------------------------------------------------------------
@functools.partial(jax.jit,
                   static_argnames=("filter_sizes", "num_labels", "tile_b", "vmem_limit"))
def _forward(tokens, kparams, *, filter_sizes, num_labels, tile_b, vmem_limit):
    B, L = tokens.shape
    embed = kparams["embed"]                            # (V, D_PAD) bf16
    d_pad = embed.shape[1]
    n_fs = len(filter_sizes)
    n_taps = sum(filter_sizes)
    f_pad = kparams["conv_b"].shape[1]
    c_pad = kparams["fc_b"].shape[1]
    fin_pad = kparams["fc_w"].shape[0]

    # Pad batch to whole tiles; pad rows use token 0 (the zero padding-idx row).
    b_pad = pl.cdiv(B, tile_b) * tile_b
    tokens_p = jnp.pad(tokens, ((0, b_pad - B), (0, 0)))
    # TODO(synk): the embedding gather could move in-kernel (scalar-prefetched tokens +
    # manual row DMA from `embed` kept in pl.ANY) to remove this HBM round trip; kept as
    # an XLA gather since per-row DMAs of D_PAD*2 bytes are tiny at these shapes.
    emb = embed[tokens_p]                               # (b_pad, L, D_PAD) bf16

    kernel = functools.partial(_fused_cnn_kernel, filter_sizes=filter_sizes)
    out = pl.pallas_call(
        kernel,
        out_shape=jax.ShapeDtypeStruct((b_pad, c_pad), jnp.float32),
        grid=(b_pad // tile_b,),
        in_specs=[
            pl.BlockSpec((tile_b, L, d_pad), lambda i: (i, 0, 0)),    # emb (batch-tiled)
            pl.BlockSpec((n_taps, d_pad, f_pad), lambda i: (0, 0, 0)),  # conv weights
            pl.BlockSpec((n_fs, f_pad), lambda i: (0, 0)),            # conv biases
            pl.BlockSpec((fin_pad, c_pad), lambda i: (0, 0)),         # fc weights
            pl.BlockSpec((1, c_pad), lambda i: (0, 0)),               # fc bias
        ],
        out_specs=pl.BlockSpec((tile_b, c_pad), lambda i: (i, 0)),
        compiler_params=pltpu.CompilerParams(
            dimension_semantics=("parallel",),          # shard batch tiles across TCs
            vmem_limit_bytes=vmem_limit,
        ),
    )(emb, kparams["w_all"], kparams["conv_b"], kparams["fc_w"], kparams["fc_b"])

    # F.dropout(..., training=False) is identity in eval mode.
    # TODO(synk): training-mode dropout (random mask + 1/(1-p) scale) not implemented.
    return out[:B, :num_labels]


def cnn_sentence_classifier_forward(tokens, kparams, *, filter_sizes, num_labels,
                                    tile_b=None):
    filter_sizes = tuple(int(f) for f in filter_sizes)
    B, L = tokens.shape
    if L < max(filter_sizes):
        raise ValueError("sequence length must be >= max(filter_sizes)")
    d_pad = kparams["embed"].shape[1]
    f_pad = kparams["conv_b"].shape[1]
    c_pad = kparams["fc_b"].shape[1]
    vmem_limit = _vmem_budget_bytes()
    if tile_b is None:
        tile_b = _choose_tile_b(B, L, d_pad, f_pad, c_pad,
                                len(filter_sizes), sum(filter_sizes), vmem_limit)
    return _forward(tokens, kparams, filter_sizes=filter_sizes,
                    num_labels=int(num_labels), tile_b=int(tile_b),
                    vmem_limit=int(vmem_limit))


# ---------------------------------------------------------------------------
# Parameter init (raw, PyTorch-layout) and packing into fused/padded kernel params.
# ---------------------------------------------------------------------------
def init_params(key, vocab_size, emb_dim, filter_sizes, num_filters, num_labels):
    keys = jax.random.split(key, 3 + 2 * len(filter_sizes))
    raw = {}
    # Embedding table; row 0 is the padding index -> zero (nn.Embedding padding_idx).
    embed = 0.1 * jax.random.normal(keys[0], (vocab_size, emb_dim), jnp.float32)
    raw["embed"] = embed.at[0].set(0.0)
    ki = 1
    for f in filter_sizes:
        fan_in = f * emb_dim
        raw[f"conv_{f}_w"] = (jax.random.normal(keys[ki], (fan_in, num_filters),
                                                jnp.float32)
                              / jnp.sqrt(jnp.float32(fan_in)))
        raw[f"conv_{f}_b"] = 0.01 * jax.random.normal(keys[ki + 1], (num_filters,),
                                                      jnp.float32)
        ki += 2
    fin = num_filters * len(filter_sizes)
    raw["fc_w"] = (jax.random.normal(keys[ki], (fin, num_labels), jnp.float32)
                   / jnp.sqrt(jnp.float32(fin)))
    raw["fc_b"] = 0.01 * jax.random.normal(keys[ki + 1], (num_labels,), jnp.float32)
    return raw


def build_kernel_params(raw, filter_sizes, emb_dim, num_filters, num_labels):
    f_pad = _round_up(num_filters, 128)
    c_pad = _round_up(num_labels, 128)
    d_pad = _round_up(emb_dim, 128)
    n_fs = len(filter_sizes)
    n_taps = sum(filter_sizes)

    # Embedding columns padded to a lane-dense width (zero pad -> zero contribution).
    embed = raw["embed"]
    embed_p = jnp.zeros((embed.shape[0], d_pad), jnp.float32).at[:, :emb_dim].set(embed)

    # Per-(filter, tap) conv weight blocks, each (D_PAD, F_PAD).
    w_all = jnp.zeros((n_taps, d_pad, f_pad), jnp.float32)
    conv_b = jnp.zeros((n_fs, f_pad), jnp.float32)
    tap = 0
    for fi, f in enumerate(filter_sizes):
        w = raw[f"conv_{f}_w"]                          # (f*D, num_filters)
        for t in range(f):
            w_all = w_all.at[tap, :emb_dim, :num_filters].set(
                w[t * emb_dim:(t + 1) * emb_dim, :])
            tap += 1
        conv_b = conv_b.at[fi, :num_filters].set(raw[f"conv_{f}_b"])

    fin_pad = n_fs * f_pad
    fc_w = jnp.zeros((fin_pad, c_pad), jnp.float32)
    for fi in range(n_fs):
        fc_w = fc_w.at[fi * f_pad:fi * f_pad + num_filters, :num_labels].set(
            raw["fc_w"][fi * num_filters:(fi + 1) * num_filters, :])
    fc_b = jnp.zeros((1, c_pad), jnp.float32).at[0, :num_labels].set(raw["fc_b"])

    return {
        "embed": embed_p.astype(jnp.bfloat16),
        "w_all": w_all.astype(jnp.bfloat16),
        "conv_b": conv_b,
        "fc_w": fc_w.astype(jnp.bfloat16),
        "fc_b": fc_b,
    }


if __name__ == "__main__":
    # Small config consistent with the module (mode='rand', eval forward).
    BATCH, SEQ_LEN, EMB_DIM = 2, 8, 32
    VOCAB_SIZE, NUM_LABELS = 50, 5
    FILTER_SIZES = (2, 3, 4)
    NUM_FILTERS = 100  # fixed at 100 in the module

    key = jax.random.PRNGKey(0)
    k_tok, k_par = jax.random.split(key)
    tokens = jax.random.randint(k_tok, (BATCH, SEQ_LEN), 0, VOCAB_SIZE, dtype=jnp.int32)

    raw = init_params(k_par, VOCAB_SIZE, EMB_DIM, FILTER_SIZES, NUM_FILTERS, NUM_LABELS)
    kparams = build_kernel_params(raw, FILTER_SIZES, EMB_DIM, NUM_FILTERS, NUM_LABELS)

    logits = cnn_sentence_classifier_forward(
        tokens, kparams, filter_sizes=FILTER_SIZES, num_labels=NUM_LABELS)
    logits = jax.block_until_ready(logits)

    assert logits.shape == (BATCH, NUM_LABELS), logits.shape
    assert logits.dtype == jnp.float32

    # Pure-JAX reference of the same math (im2col form of Conv1d(kernel=f*D, stride=D)),
    # using the same bf16-rounded parameters and f32 accumulation.
    hi = jax.lax.Precision.HIGHEST
    emb_f = raw["embed"].astype(jnp.bfloat16).astype(jnp.float32)[tokens]  # (B, L, D)
    pooled_ref = []
    for f in FILTER_SIZES:
        w_f = raw[f"conv_{f}_w"].astype(jnp.bfloat16).astype(jnp.float32)
        b_f = raw[f"conv_{f}_b"]
        lout = SEQ_LEN - f + 1
        wins = jnp.stack(
            [emb_f[:, t:t + f, :].reshape(BATCH, f * EMB_DIM) for t in range(lout)],
            axis=1)                                                  # (B, lout, f*D)
        s = jnp.einsum("blk,kf->blf", wins, w_f, precision=hi) + b_f
        pooled_ref.append(jnp.max(jnp.maximum(s, 0.0), axis=1))
    feat_ref = jnp.concatenate(pooled_ref, axis=1)                   # (B, 300)
    feat_ref = feat_ref.astype(jnp.bfloat16).astype(jnp.float32)     # match kernel bf16 FC
    fc_w_f = raw["fc_w"].astype(jnp.bfloat16).astype(jnp.float32)
    ref = jnp.matmul(feat_ref, fc_w_f, precision=hi) + raw["fc_b"]

    assert jnp.allclose(logits, ref, atol=5e-3, rtol=5e-3), \
        float(jnp.max(jnp.abs(logits - ref)))

    print("KERNEL_OK")
</pallas_src>

<mosaic_0001>
module attributes {stable_mosaic.version = 11 : i64} {
  func.func @_fused_cnn_kernel(%arg0: i32, %arg1: memref<8x8x128xbf16, #tpu.memory_space<vmem>>, %arg2: memref<9x128x128xbf16, #tpu.memory_space<vmem>>, %arg3: memref<3x128xf32, #tpu.memory_space<vmem>>, %arg4: memref<384x128xbf16, #tpu.memory_space<vmem>>, %arg5: memref<1x128xf32, #tpu.memory_space<vmem>>, %arg6: memref<8x128xf32, #tpu.memory_space<vmem>>) attributes {dimension_semantics = [#tpu.dimension_semantics<parallel>], iteration_bounds = array<i64: 1>, scalar_prefetch = 0 : i64, scratch_operands = 0 : i64, tpu.core_type = #tpu.core_type<tc>, window_params = [{transform_indices = @transform_0, window_bounds = array<i64: 8, 8, 128>}, {pipeline_mode = #tpu.pipeline_mode<synchronous>, transform_indices = @transform_1, window_bounds = array<i64: 9, 128, 128>}, {pipeline_mode = #tpu.pipeline_mode<synchronous>, transform_indices = @transform_2, window_bounds = array<i64: 3, 128>}, {pipeline_mode = #tpu.pipeline_mode<synchronous>, transform_indices = @transform_3, window_bounds = array<i64: 384, 128>}, {pipeline_mode = #tpu.pipeline_mode<synchronous>, transform_indices = @transform_4, window_bounds = array<i64: 1, 128>}, {transform_indices = @transform_5, window_bounds = array<i64: 8, 128>}]} {
    %c0 = arith.constant 0 : index
    %c0_0 = arith.constant 0 : index
    %c0_1 = arith.constant 0 : index
    %0 = vector.load %arg1[%c0, %c0_0, %c0_1] : memref<8x8x128xbf16, #tpu.memory_space<vmem>>, vector<8x8x128xbf16>
    %c0_2 = arith.constant 0 : index
    %c0_3 = arith.constant 0 : index
    %1 = vector.load %arg3[%c0_2, %c0_3] : memref<3x128xf32, #tpu.memory_space<vmem>>, vector<3x128xf32>
    %2 = vector.extract_strided_slice %0 {offsets = [0, 0, 0], sizes = [8, 7, 128], strides = [1, 1, 1]} : vector<8x8x128xbf16> to vector<8x7x128xbf16>
    %c0_4 = arith.constant 0 : index
    %c0_5 = arith.constant 0 : index
    %c0_6 = arith.constant 0 : index
    %3 = vector.load %arg2[%c0_4, %c0_5, %c0_6] : memref<9x128x128xbf16, #tpu.memory_space<vmem>>, vector<1x128x128xbf16>
    %4 = vector.shape_cast %3 : vector<1x128x128xbf16> to vector<128x128xbf16>
    %cst = arith.constant dense<0.000000e+00> : vector<8x7x128xf32>
    %5 = tpu.matmul %2, %4, %cst {dimension_numbers = #tpu.dot_dimension_numbers<[2], [0], [0, 1], [1], [0, 0, 0, 1, 1, 1], [], []>} : vector<8x7x128xbf16>, vector<128x128xbf16>, vector<8x7x128xf32> -> vector<8x7x128xf32>
    %6 = vector.extract_strided_slice %0 {offsets = [0, 1, 0], sizes = [8, 7, 128], strides = [1, 1, 1]} : vector<8x8x128xbf16> to vector<8x7x128xbf16>
    %c1 = arith.constant 1 : index
    %c0_7 = arith.constant 0 : index
    %c0_8 = arith.constant 0 : index
    %7 = vector.load %arg2[%c1, %c0_7, %c0_8] : memref<9x128x128xbf16, #tpu.memory_space<vmem>>, vector<1x128x128xbf16>
    %8 = vector.shape_cast %7 : vector<1x128x128xbf16> to vector<128x128xbf16>
    %cst_9 = arith.constant dense<0.000000e+00> : vector<8x7x128xf32>
    %9 = tpu.matmul %6, %8, %cst_9 {dimension_numbers = #tpu.dot_dimension_numbers<[2], [0], [0, 1], [1], [0, 0, 0, 1, 1, 1], [], []>} : vector<8x7x128xbf16>, vector<128x128xbf16>, vector<8x7x128xf32> -> vector<8x7x128xf32>
    %10 = arith.addf %5, %9 : vector<8x7x128xf32>
    %cst_10 = arith.constant dense<0xFF800000> : vector<8x128xf32>
    %11 = vector.multi_reduction <maximumf>, %10, %cst_10 [1] : vector<8x7x128xf32> to vector<8x128xf32>
    %12 = vector.extract_strided_slice %1 {offsets = [0, 0], sizes = [1, 128], strides = [1, 1]} : vector<3x128xf32> to vector<1x128xf32>
    %13 = vector.broadcast %12 : vector<1x128xf32> to vector<8x128xf32>
    %14 = arith.addf %11, %13 : vector<8x128xf32>
    %cst_11 = arith.constant 0.000000e+00 : f32
    %15 = vector.broadcast %cst_11 : f32 to vector<8x128xf32>
    %16 = arith.maximumf %14, %15 : vector<8x128xf32>
    %17 = arith.truncf %16 : vector<8x128xf32> to vector<8x128xbf16>
    %18 = vector.extract_strided_slice %0 {offsets = [0, 0, 0], sizes = [8, 6, 128], strides = [1, 1, 1]} : vector<8x8x128xbf16> to vector<8x6x128xbf16>
    %c2 = arith.constant 2 : index
    %c0_12 = arith.constant 0 : index
    %c0_13 = arith.constant 0 : index
    %19 = vector.load %arg2[%c2, %c0_12, %c0_13] : memref<9x128x128xbf16, #tpu.memory_space<vmem>>, vector<1x128x128xbf16>
    %20 = vector.shape_cast %19 : vector<1x128x128xbf16> to vector<128x128xbf16>
    %cst_14 = arith.constant dense<0.000000e+00> : vector<8x6x128xf32>
    %21 = tpu.matmul %18, %20, %cst_14 {dimension_numbers = #tpu.dot_dimension_numbers<[2], [0], [0, 1], [1], [0, 0, 0, 1, 1, 1], [], []>} : vector<8x6x128xbf16>, vector<128x128xbf16>, vector<8x6x128xf32> -> vector<8x6x128xf32>
    %22 = vector.extract_strided_slice %0 {offsets = [0, 1, 0], sizes = [8, 6, 128], strides = [1, 1, 1]} : vector<8x8x128xbf16> to vector<8x6x128xbf16>
    %c3 = arith.constant 3 : index
    %c0_15 = arith.constant 0 : index
    %c0_16 = arith.constant 0 : index
    %23 = vector.load %arg2[%c3, %c0_15, %c0_16] : memref<9x128x128xbf16, #tpu.memory_space<vmem>>, vector<1x128x128xbf16>
    %24 = vector.shape_cast %23 : vector<1x128x128xbf16> to vector<128x128xbf16>
    %cst_17 = arith.constant dense<0.000000e+00> : vector<8x6x128xf32>
    %25 = tpu.matmul %22, %24, %cst_17 {dimension_numbers = #tpu.dot_dimension_numbers<[2], [0], [0, 1], [1], [0, 0, 0, 1, 1, 1], [], []>} : vector<8x6x128xbf16>, vector<128x128xbf16>, vector<8x6x128xf32> -> vector<8x6x128xf32>
    %26 = arith.addf %21, %25 : vector<8x6x128xf32>
    %27 = vector.extract_strided_slice %0 {offsets = [0, 2, 0], sizes = [8, 6, 128], strides = [1, 1, 1]} : vector<8x8x128xbf16> to vector<8x6x128xbf16>
    %c4 = arith.constant 4 : index
    %c0_18 = arith.constant 0 : index
    %c0_19 = arith.constant 0 : index
    %28 = vector.load %arg2[%c4, %c0_18, %c0_19] : memref<9x128x128xbf16, #tpu.memory_space<vmem>>, vector<1x128x128xbf16>
    %29 = vector.shape_cast %28 : vector<1x128x128xbf16> to vector<128x128xbf16>
    %cst_20 = arith.constant dense<0.000000e+00> : vector<8x6x128xf32>
    %30 = tpu.matmul %27, %29, %cst_20 {dimension_numbers = #tpu.dot_dimension_numbers<[2], [0], [0, 1], [1], [0, 0, 0, 1, 1, 1], [], []>} : vector<8x6x128xbf16>, vector<128x128xbf16>, vector<8x6x128xf32> -> vector<8x6x128xf32>
    %31 = arith.addf %26, %30 : vector<8x6x128xf32>
    %cst_21 = arith.constant dense<0xFF800000> : vector<8x128xf32>
    %32 = vector.multi_reduction <maximumf>, %31, %cst_21 [1] : vector<8x6x128xf32> to vector<8x128xf32>
    %33 = vector.extract_strided_slice %1 {offsets = [1, 0], sizes = [1, 128], strides = [1, 1]} : vector<3x128xf32> to vector<1x128xf32>
    %34 = vector.broadcast %33 : vector<1x128xf32> to vector<8x128xf32>
    %35 = arith.addf %32, %34 : vector<8x128xf32>
    %cst_22 = arith.constant 0.000000e+00 : f32
    %36 = vector.broadcast %cst_22 : f32 to vector<8x128xf32>
    %37 = arith.maximumf %35, %36 : vector<8x128xf32>
    %38 = arith.truncf %37 : vector<8x128xf32> to vector<8x128xbf16>
    %39 = vector.extract_strided_slice %0 {offsets = [0, 0, 0], sizes = [8, 5, 128], strides = [1, 1, 1]} : vector<8x8x128xbf16> to vector<8x5x128xbf16>
    %c5 = arith.constant 5 : index
    %c0_23 = arith.constant 0 : index
    %c0_24 = arith.constant 0 : index
    %40 = vector.load %arg2[%c5, %c0_23, %c0_24] : memref<9x128x128xbf16, #tpu.memory_space<vmem>>, vector<1x128x128xbf16>
    %41 = vector.shape_cast %40 : vector<1x128x128xbf16> to vector<128x128xbf16>
    %cst_25 = arith.constant dense<0.000000e+00> : vector<8x5x128xf32>
    %42 = tpu.matmul %39, %41, %cst_25 {dimension_numbers = #tpu.dot_dimension_numbers<[2], [0], [0, 1], [1], [0, 0, 0, 1, 1, 1], [], []>} : vector<8x5x128xbf16>, vector<128x128xbf16>, vector<8x5x128xf32> -> vector<8x5x128xf32>
    %43 = vector.extract_strided_slice %0 {offsets = [0, 1, 0], sizes = [8, 5, 128], strides = [1, 1, 1]} : vector<8x8x128xbf16> to vector<8x5x128xbf16>
    %c6 = arith.constant 6 : index
    %c0_26 = arith.constant 0 : index
    %c0_27 = arith.constant 0 : index
    %44 = vector.load %arg2[%c6, %c0_26, %c0_27] : memref<9x128x128xbf16, #tpu.memory_space<vmem>>, vector<1x128x128xbf16>
    %45 = vector.shape_cast %44 : vector<1x128x128xbf16> to vector<128x128xbf16>
    %cst_28 = arith.constant dense<0.000000e+00> : vector<8x5x128xf32>
    %46 = tpu.matmul %43, %45, %cst_28 {dimension_numbers = #tpu.dot_dimension_numbers<[2], [0], [0, 1], [1], [0, 0, 0, 1, 1, 1], [], []>} : vector<8x5x128xbf16>, vector<128x128xbf16>, vector<8x5x128xf32> -> vector<8x5x128xf32>
    %47 = arith.addf %42, %46 : vector<8x5x128xf32>
    %48 = vector.extract_strided_slice %0 {offsets = [0, 2, 0], sizes = [8, 5, 128], strides = [1, 1, 1]} : vector<8x8x128xbf16> to vector<8x5x128xbf16>
    %c7 = arith.constant 7 : index
    %c0_29 = arith.constant 0 : index
    %c0_30 = arith.constant 0 : index
    %49 = vector.load %arg2[%c7, %c0_29, %c0_30] : memref<9x128x128xbf16, #tpu.memory_space<vmem>>, vector<1x128x128xbf16>
    %50 = vector.shape_cast %49 : vector<1x128x128xbf16> to vector<128x128xbf16>
    %cst_31 = arith.constant dense<0.000000e+00> : vector<8x5x128xf32>
    %51 = tpu.matmul %48, %50, %cst_31 {dimension_numbers = #tpu.dot_dimension_numbers<[2], [0], [0, 1], [1], [0, 0, 0, 1, 1, 1], [], []>} : vector<8x5x128xbf16>, vector<128x128xbf16>, vector<8x5x128xf32> -> vector<8x5x128xf32>
    %52 = arith.addf %47, %51 : vector<8x5x128xf32>
    %53 = vector.extract_strided_slice %0 {offsets = [0, 3, 0], sizes = [8, 5, 128], strides = [1, 1, 1]} : vector<8x8x128xbf16> to vector<8x5x128xbf16>
    %c8 = arith.constant 8 : index
    %c0_32 = arith.constant 0 : index
    %c0_33 = arith.constant 0 : index
    %54 = vector.load %arg2[%c8, %c0_32, %c0_33] : memref<9x128x128xbf16, #tpu.memory_space<vmem>>, vector<1x128x128xbf16>
    %55 = vector.shape_cast %54 : vector<1x128x128xbf16> to vector<128x128xbf16>
    %cst_34 = arith.constant dense<0.000000e+00> : vector<8x5x128xf32>
    %56 = tpu.matmul %53, %55, %cst_34 {dimension_numbers = #tpu.dot_dimension_numbers<[2], [0], [0, 1], [1], [0, 0, 0, 1, 1, 1], [], []>} : vector<8x5x128xbf16>, vector<128x128xbf16>, vector<8x5x128xf32> -> vector<8x5x128xf32>
    %57 = arith.addf %52, %56 : vector<8x5x128xf32>
    %cst_35 = arith.constant dense<0xFF800000> : vector<8x128xf32>
    %58 = vector.multi_reduction <maximumf>, %57, %cst_35 [1] : vector<8x5x128xf32> to vector<8x128xf32>
    %59 = vector.extract_strided_slice %1 {offsets = [2, 0], sizes = [1, 128], strides = [1, 1]} : vector<3x128xf32> to vector<1x128xf32>
    %60 = vector.broadcast %59 : vector<1x128xf32> to vector<8x128xf32>
    %61 = arith.addf %58, %60 : vector<8x128xf32>
    %cst_36 = arith.constant 0.000000e+00 : f32
    %62 = vector.broadcast %cst_36 : f32 to vector<8x128xf32>
    %63 = arith.maximumf %61, %62 : vector<8x128xf32>
    %64 = arith.truncf %63 : vector<8x128xf32> to vector<8x128xbf16>
    %65 = tpu.concatenate %17, %38, %64 in 1 : vector<8x128xbf16>, vector<8x128xbf16>, vector<8x128xbf16> -> vector<8x384xbf16>
    %c0_37 = arith.constant 0 : index
    %c0_38 = arith.constant 0 : index
    %66 = vector.load %arg4[%c0_37, %c0_38] : memref<384x128xbf16, #tpu.memory_space<vmem>>, vector<384x128xbf16>
    %cst_39 = arith.constant dense<0.000000e+00> : vector<8x128xf32>
    %67 = tpu.matmul %65, %66, %cst_39 {dimension_numbers = #tpu.dot_dimension_numbers<[1], [0], [0], [1], [0, 0, 1, 1], [], []>} : vector<8x384xbf16>, vector<384x128xbf16>, vector<8x128xf32> -> vector<8x128xf32>
    %c0_40 = arith.constant 0 : index
    %c0_41 = arith.constant 0 : index
    %68 = vector.load %arg5[%c0_40, %c0_41] : memref<1x128xf32, #tpu.memory_space<vmem>>, vector<1x128xf32>
    %69 = vector.broadcast %68 : vector<1x128xf32> to vector<8x128xf32>
    %70 = arith.addf %67, %69 : vector<8x128xf32>
    %c0_42 = arith.constant 0 : index
    %c0_43 = arith.constant 0 : index
    %71 = vector.load %arg6[%c0_42, %c0_43] : memref<8x128xf32, #tpu.memory_space<vmem>>, vector<8x128xf32>
    tpu.vector_store %arg6[%c0_42, %c0_43], %70 {strides = array<i32>} : memref<8x128xf32, #tpu.memory_space<vmem>>, vector<8x128xf32>,
    return
  }
  func.func @transform_0(%arg0: i32) -> (i32, i32, i32) {
    %c0_i32 = arith.constant 0 : i32
    %c0_i32_0 = arith.constant 0 : i32
    %c0_i32_1 = arith.constant 0 : i32
    return %arg0, %c0_i32, %c0_i32_0 : i32, i32, i32
  }
  func.func @transform_1(%arg0: i32) -> (i32, i32, i32) {
    %c0_i32 = arith.constant 0 : i32
    %c0_i32_0 = arith.constant 0 : i32
    %c0_i32_1 = arith.constant 0 : i32
    %c0_i32_2 = arith.constant 0 : i32
    return %c0_i32, %c0_i32_0, %c0_i32_1 : i32, i32, i32
  }
  func.func @transform_2(%arg0: i32) -> (i32, i32) {
    %c0_i32 = arith.constant 0 : i32
    %c0_i32_0 = arith.constant 0 : i32
    %c0_i32_1 = arith.constant 0 : i32
    return %c0_i32, %c0_i32_0 : i32, i32
  }
  func.func @transform_3(%arg0: i32) -> (i32, i32) {
    %c0_i32 = arith.constant 0 : i32
    %c0_i32_0 = arith.constant 0 : i32
    %c0_i32_1 = arith.constant 0 : i32
    return %c0_i32, %c0_i32_0 : i32, i32
  }
  func.func @transform_4(%arg0: i32) -> (i32, i32) {
    %c0_i32 = arith.constant 0 : i32
    %c0_i32_0 = arith.constant 0 : i32
    %c0_i32_1 = arith.constant 0 : i32
    return %c0_i32, %c0_i32_0 : i32, i32
  }
  func.func @transform_5(%arg0: i32) -> (i32, i32) {
    %c0_i32 = arith.constant 0 : i32
    %c0_i32_0 = arith.constant 0 : i32
    return %arg0, %c0_i32 : i32, i32
  }
}

</mosaic_0001>

<llo_original>
// kernel: _forward.1
$region0: #{_forward.1}
  #allocation0 [shape = 'u32[]', space=smem, size = 0x4, offset = 0x4, fixed_abs, tag = 'smem constant byte address 0x4 - core index']
  #allocation1 [shape = 'u32[72,128]{1,0:T(1,128)}', space=vmem, size = 0x9000, scoped, tag = 'internal scratch']
  %s0 = inlined_call_operand.vmem [shape: bf16[8,8,128], index: 0, kind: input, shape index: {}]
  %s1 = inlined_call_operand.hbm [shape: bf16[9,128,128], index: 1, kind: input, shape index: {}]
  %s2 = inlined_call_operand.vmem [shape: f32[3,128], index: 2, kind: input, shape index: {}]
  %s3 = inlined_call_operand.vmem [shape: bf16[384,128], index: 3, kind: input, shape index: {}]
  %s4 = inlined_call_operand.vmem [shape: f32[1,128], index: 4, kind: input, shape index: {}]
  %s5 = inlined_call_operand.vmem [shape: f32[8,128], index: 5, kind: output, shape index: {}]
  %s6 = sld [smem:[#allocation0]]
  $region34: #{_forward.1} parent=0
    _
  %s8 = ssub.s32 1, %s6
  %s9 = scalar_select 0, %s8, %s6
  $region1: #{_forward.1} parent=0
    #allocation2 [shape = 'u8[294912]{0}', space=vmem, size = 0x48000, scoped, tag = 'input window, operand 1, single buffered']
    #allocation3 [shape = 's32[1]{0}', space=sflag, size = 0x4, scoped, tag = 'scoped memory for _forward.1']
    %10 = vsyncpa [#allocation3], 0
    // Predicated region
    $region2: #{_forward.1} parent=1 // pred_check
      _
    $region3: #{_forward.1} parent=1 // pred_check_branch
      %12 = sbr.rel (0) target = $region5
    $region4: #{_forward.1} parent=1 // pred_region
      _
    $region5: #{_forward.1} parent=1 // pred_fallthru
      _
    // Predicated region
    $region6: #{_forward.1} parent=1 // pred_check
      _
    $region7: #{_forward.1} parent=1 // pred_check_branch
      %14 = sbr.rel (0) target = $region9
    $region8: #{_forward.1} parent=1 // pred_region
      %16 = vsyncadd [#allocation3], 0
      %s17 = sshll.u32 %s1, 4
      %s18 = int_to_ptr.hbm [resolvable:$true] %s17
      %s19 = sshll.u32 [#allocation2], 4
      %s20 = int_to_ptr.vmem [resolvable:$true] %s19
      %25 = dma.hbm_to_vmem [thread:$0]  %s18, 9216, %s20, [#allocation3], 64, 64, 4
    $region9: #{_forward.1} parent=1 // pred_fallthru
      _
    // Predicated region
    $region10: #{_forward.1} parent=1 // pred_check
      _
    $region11: #{_forward.1} parent=1 // pred_check_branch
      %27 = sbr.rel (0) target = $region13
    $region12: #{_forward.1} parent=1 // pred_region
      _
    $region13: #{_forward.1} parent=1 // pred_fallthru
      _
    // Predicated region
    $region14: #{_forward.1} parent=1 // pred_check
      _
    $region15: #{_forward.1} parent=1 // pred_check_branch
      %29 = sbr.rel (0) target = $region17
    $region16: #{_forward.1} parent=1 // pred_region
      _
    $region17: #{_forward.1} parent=1 // pred_fallthru
      _
    // Predicated region
    $region18: #{_forward.1} parent=1 // pred_check
      _
    $region19: #{_forward.1} parent=1 // pred_check_branch
      %31 = sbr.rel (0) target = $region21
    $region20: #{_forward.1} parent=1 // pred_region
      _
    $region21: #{_forward.1} parent=1 // pred_fallthru
      _
    // Predicated region
    $region22: #{_forward.1} parent=1 // pred_check
      _
    $region23: #{_forward.1} parent=1 // pred_check_branch
      %33 = sbr.rel (0) target = $region25
    $region24: #{_forward.1} parent=1 // pred_region
      %35 = dma.done [#allocation3], 9216
    $region25: #{_forward.1} parent=1 // pred_fallthru
      _
    %v36 = vld [vmem:[%s0] sm:$0xf]
    %v37 = vld [vmem:[%s0 + $0x4] sm:$0xf]
    %v38 = vld [vmem:[%s0 + $0x8] sm:$0xf]
    %v39 = vld [vmem:[%s0 + $0xc] sm:$0xf]
    %v40 = vld [vmem:[%s0 + $0x10] sm:$0xf]
    %v41 = vld [vmem:[%s0 + $0x14] sm:$0xf]
    %v42 = vld [vmem:[%s0 + $0x18] sm:$0xf]
    %v43 = vld [vmem:[%s0 + $0x1c] sm:$0xf]
    %v44 = vld [vmem:[%s2] sm:$0x7]
    %v45 = vld [vmem:[#allocation2] sm:$0xf]
    %v46 = vld [vmem:[#allocation2 + $0x4] sm:$0xf]
    %v47 = vld [vmem:[#allocation2 + $0x8] sm:$0xf]
    %v48 = vld [vmem:[#allocation2 + $0xc] sm:$0xf]
    %v49 = vld [vmem:[#allocation2 + $0x10] sm:$0xf]
    %v50 = vld [vmem:[#allocation2 + $0x14] sm:$0xf]
    %v51 = vld [vmem:[#allocation2 + $0x18] sm:$0xf]
    %v52 = vld [vmem:[#allocation2 + $0x1c] sm:$0xf]
    %v53 = vld [vmem:[#allocation2 + $0x20] sm:$0xf]
    %v54 = vld [vmem:[#allocation2 + $0x24] sm:$0xf]
    %v55 = vld [vmem:[#allocation2 + $0x28] sm:$0xf]
    %v56 = vld [vmem:[#allocation2 + $0x2c] sm:$0xf]
    %v57 = vld [vmem:[#allocation2 + $0x30] sm:$0xf]
    %v58 = vld [vmem:[#allocation2 + $0x34] sm:$0xf]
    %v59 = vld [vmem:[#allocation2 + $0x38] sm:$0xf]
    %v60 = vld [vmem:[#allocation2 + $0x3c] sm:$0xf]
    %s61 = scalar_lea.vmem [#allocation2], 64
    %v62 = vld [vmem:[%s61] sm:$0xf]
    %v63 = vld [vmem:[%s61 + $0x4] sm:$0xf]
    %v64 = vld [vmem:[%s61 + $0x8] sm:$0xf]
    %v65 = vld [vmem:[%s61 + $0xc] sm:$0xf]
    %v66 = vld [vmem:[%s61 + $0x10] sm:$0xf]
    %v67 = vld [vmem:[%s61 + $0x14] sm:$0xf]
    %v68 = vld [vmem:[%s61 + $0x18] sm:$0xf]
    %v69 = vld [vmem:[%s61 + $0x1c] sm:$0xf]
    %v70 = vld [vmem:[%s61 + $0x20] sm:$0xf]
    %v71 = vld [vmem:[%s61 + $0x24] sm:$0xf]
    %v72 = vld [vmem:[%s61 + $0x28] sm:$0xf]
    %v73 = vld [vmem:[%s61 + $0x2c] sm:$0xf]
    %v74 = vld [vmem:[%s61 + $0x30] sm:$0xf]
    %v75 = vld [vmem:[%s61 + $0x34] sm:$0xf]
    %v76 = vld [vmem:[%s61 + $0x38] sm:$0xf]
    %v77 = vld [vmem:[%s61 + $0x3c] sm:$0xf]
    %v86 = vrot.slane %v36, 3
    %v87 = vrot.slane %v37, 3
    %v88 = vrot.slane %v38, 3
    %v89 = vrot.slane %v39, 3
    %v90 = vrot.slane %v40, 3
    %v91 = vrot.slane %v41, 3
    %v92 = vrot.slane %v42, 3
    %v93 = vrot.slane %v43, 3
    %vm94 = vcmask 1040384
    %v97 = vsel %vm94, %v36, %v86
    %vm99 = vcmask 1041409
    %v100 = vsel %vm99, %v36, %v86
    %v102 = vrot.slane %v100, 1
    %vm103 = vcmask 1042434
    %v104 = vsel %vm103, %v36, %v86
    %v106 = vrot.slane %v104, 2
    %vm107 = vcmask 1043459
    %v108 = vsel %vm107, %v36, %v86
    %v110 = vrot.slane %v108, 3
    %v113 = vsel %vm94, %v37, %v87
    %v115 = vsel %vm99, %v37, %v87
    %v117 = vrot.slane %v115, 1
    %v118 = vsel %vm103, %v37, %v87
    %v120 = vrot.slane %v118, 2
    %v121 = vsel %vm107, %v37, %v87
    %v123 = vrot.slane %v121, 3
    %v126 = vsel %vm94, %v38, %v88
    %v128 = vsel %vm99, %v38, %v88
    %v130 = vrot.slane %v128, 1
    %v131 = vsel %vm103, %v38, %v88
    %v133 = vrot.slane %v131, 2
    %v134 = vsel %vm107, %v38, %v88
    %v136 = vrot.slane %v134, 3
    %v139 = vsel %vm94, %v39, %v89
    %v141 = vsel %vm99, %v39, %v89
    %v143 = vrot.slane %v141, 1
    %v144 = vsel %vm103, %v39, %v89
    %v146 = vrot.slane %v144, 2
    %v147 = vsel %vm107, %v39, %v89
    %v149 = vrot.slane %v147, 3
    %v152 = vsel %vm94, %v40, %v90
    %v154 = vsel %vm99, %v40, %v90
    %v156 = vrot.slane %v154, 1
    %v157 = vsel %vm103, %v40, %v90
    %v159 = vrot.slane %v157, 2
    %v160 = vsel %vm107, %v40, %v90
    %v162 = vrot.slane %v160, 3
    %v165 = vsel %vm94, %v41, %v91
    %v167 = vsel %vm99, %v41, %v91
    %v169 = vrot.slane %v167, 1
    %v170 = vsel %vm103, %v41, %v91
    %v172 = vrot.slane %v170, 2
    %v173 = vsel %vm107, %v41, %v91
    %v175 = vrot.slane %v173, 3
    %v178 = vsel %vm94, %v42, %v92
    %v180 = vsel %vm99, %v42, %v92
    %v182 = vrot.slane %v180, 1
    %v183 = vsel %vm103, %v42, %v92
    %v185 = vrot.slane %v183, 2
    %v186 = vsel %vm107, %v42, %v92
    %v188 = vrot.slane %v186, 3
    %v191 = vsel %vm94, %v43, %v93
    %v193 = vsel %vm99, %v43, %v93
    %v195 = vrot.slane %v193, 1
    %v196 = vsel %vm103, %v43, %v93
    %v198 = vrot.slane %v196, 2
    %v199 = vsel %vm107, %v43, %v93
    %v201 = vrot.slane %v199, 3
    %v202 = vunpack.i.h.s16 %v97
    %v203 = vunpack.i.l.s16 %v102
    %v204 = vunpack.i.h.s16 %v102
    %v205 = vunpack.i.l.s16 %v106
    %v206 = vunpack.i.h.s16 %v106
    %v207 = vunpack.i.l.s16 %v110
    %v208 = vunpack.i.h.s16 %v110
    %v209 = vunpack.i.h.s16 %v113
    %v210 = vunpack.i.l.s16 %v117
    %v211 = vunpack.i.h.s16 %v117
    %v212 = vunpack.i.l.s16 %v120
    %v213 = vunpack.i.h.s16 %v120
    %v214 = vunpack.i.l.s16 %v123
    %v215 = vunpack.i.h.s16 %v123
    %v216 = vunpack.i.h.s16 %v126
    %v217 = vunpack.i.l.s16 %v130
    %v218 = vunpack.i.h.s16 %v130
    %v219 = vunpack.i.l.s16 %v133
    %v220 = vunpack.i.h.s16 %v133
    %v221 = vunpack.i.l.s16 %v136
    %v222 = vunpack.i.h.s16 %v136
    %v223 = vunpack.i.h.s16 %v139
    %v224 = vunpack.i.l.s16 %v143
    %v225 = vunpack.i.h.s16 %v143
    %v226 = vunpack.i.l.s16 %v146
    %v227 = vunpack.i.h.s16 %v146
    %v228 = vunpack.i.l.s16 %v149
    %v229 = vunpack.i.h.s16 %v149
    %v230 = vunpack.i.h.s16 %v152
    %v231 = vunpack.i.l.s16 %v156
    %v232 = vunpack.i.h.s16 %v156
    %v233 = vunpack.i.l.s16 %v159
    %v234 = vunpack.i.h.s16 %v159
    %v235 = vunpack.i.l.s16 %v162
    %v236 = vunpack.i.h.s16 %v162
    %v237 = vunpack.i.h.s16 %v165
    %v238 = vunpack.i.l.s16 %v169
    %v239 = vunpack.i.h.s16 %v169
    %v240 = vunpack.i.l.s16 %v172
    %v241 = vunpack.i.h.s16 %v172
    %v242 = vunpack.i.l.s16 %v175
    %v243 = vunpack.i.h.s16 %v175
    %v244 = vunpack.i.h.s16 %v178
    %v245 = vunpack.i.l.s16 %v182
    %v246 = vunpack.i.h.s16 %v182
    %v247 = vunpack.i.l.s16 %v185
    %v248 = vunpack.i.h.s16 %v185
    %v249 = vunpack.i.l.s16 %v188
    %v250 = vunpack.i.h.s16 %v188
    %v251 = vunpack.i.h.s16 %v191
    %v252 = vunpack.i.l.s16 %v195
    %v253 = vunpack.i.h.s16 %v195
    %v254 = vunpack.i.l.s16 %v198
    %v255 = vunpack.i.h.s16 %v198
    %v256 = vunpack.i.l.s16 %v201
    %v257 = vunpack.i.h.s16 %v201
    %v258 = vpack.i.b16 %v203, %v202
    %v259 = vpack.i.b16 %v205, %v204
    %v260 = vpack.i.b16 %v207, %v206
    %v261 = vpack.i.b16 %v209, %v208
    %v262 = vpack.i.b16 %v211, %v210
    %v263 = vpack.i.b16 %v213, %v212
    %v264 = vpack.i.b16 %v215, %v214
    %v265 = vpack.i.b16 %v217, %v216
    %v266 = vpack.i.b16 %v219, %v218
    %v267 = vpack.i.b16 %v221, %v220
    %v268 = vpack.i.b16 %v223, %v222
    %v269 = vpack.i.b16 %v225, %v224
    %v270 = vpack.i.b16 %v227, %v226
    %v271 = vpack.i.b16 %v229, %v228
    %v272 = vpack.i.b16 %v231, %v230
    %v273 = vpack.i.b16 %v233, %v232
    %v274 = vpack.i.b16 %v235, %v234
    %v275 = vpack.i.b16 %v237, %v236
    %v276 = vpack.i.b16 %v239, %v238
    %v277 = vpack.i.b16 %v241, %v240
    %v278 = vpack.i.b16 %v243, %v242
    %v279 = vpack.i.b16 %v245, %v244
    %v280 = vpack.i.b16 %v247, %v246
    %v281 = vpack.i.b16 %v249, %v248
    %v282 = vpack.i.b16 %v251, %v250
    %v283 = vpack.i.b16 %v253, %v252
    %v284 = vpack.i.b16 %v255, %v254
    %v285 = vpack.i.b16 %v257, %v256
    %287 = vst [vmem:[#allocation1] ss:$9 sm:$0xff] %v258
    %s289 = scalar_lea.vmem [#allocation1], 1
    %290 = vst [vmem:[%s289] ss:$9 sm:$0xff] %v259
    %s292 = scalar_lea.vmem [#allocation1], 2
    %293 = vst [vmem:[%s292] ss:$9 sm:$0xff] %v260
    %s295 = scalar_lea.vmem [#allocation1], 3
    %296 = vst [vmem:[%s295] ss:$9 sm:$0xff] %v261
    %s298 = scalar_lea.vmem [#allocation1], 4
    %299 = vst [vmem:[%s298] ss:$9 sm:$0xff] %v262
    %s301 = scalar_lea.vmem [#allocation1], 5
    %302 = vst [vmem:[%s301] ss:$9 sm:$0xff] %v263
    %s304 = scalar_lea.vmem [#allocation1], 6
    %305 = vst [vmem:[%s304] ss:$9 sm:$0xff] %v264
    %s307 = scalar_lea.vmem [#allocation1], 7
    %308 = vst [vmem:[%s307] ss:$9 sm:$0xff] %v265
    %v309 = vld [vmem:[#allocation1] sm:$0xff]
    %311 = vst [vmem:[#allocation1] ss:$9 sm:$0xff] %v266
    %313 = vst [vmem:[%s289] ss:$9 sm:$0xff] %v267
    %315 = vst [vmem:[%s292] ss:$9 sm:$0xff] %v268
    %317 = vst [vmem:[%s295] ss:$9 sm:$0xff] %v269
    %319 = vst [vmem:[%s298] ss:$9 sm:$0xff] %v270
    %321 = vst [vmem:[%s301] ss:$9 sm:$0xff] %v271
    %323 = vst [vmem:[%s304] ss:$9 sm:$0xff] %v272
    %325 = vst [vmem:[%s307] ss:$9 sm:$0xff] %v273
    %v326 = vld [vmem:[#allocation1] sm:$0xff]
    %328 = vst [vmem:[#allocation1] ss:$9 sm:$0xff] %v274
    %330 = vst [vmem:[%s289] ss:$9 sm:$0xff] %v275
    %332 = vst [vmem:[%s292] ss:$9 sm:$0xff] %v276
    %334 = vst [vmem:[%s295] ss:$9 sm:$0xff] %v277
    %336 = vst [vmem:[%s298] ss:$9 sm:$0xff] %v278
    %338 = vst [vmem:[%s301] ss:$9 sm:$0xff] %v279
    %340 = vst [vmem:[%s304] ss:$9 sm:$0xff] %v280
    %342 = vst [vmem:[%s307] ss:$9 sm:$0xff] %v281
    %v343 = vld [vmem:[#allocation1] sm:$0xff]
    %345 = vst [vmem:[#allocation1] ss:$9 sm:$0xff] %v282
    %347 = vst [vmem:[%s289] ss:$9 sm:$0xff] %v283
    %349 = vst [vmem:[%s292] ss:$9 sm:$0xff] %v284
    %351 = vst [vmem:[%s295] ss:$9 sm:$0xff] %v285
    %v352 = vld [vmem:[#allocation1] sm:$0xff]
    %v373 = vunpack.c.l.b16 %v62
    %v374 = vunpack.c.l.b16 %v63
    %v375 = vunpack.c.l.b16 %v64
    %v376 = vunpack.c.l.b16 %v65
    %v377 = vunpack.c.l.b16 %v66
    %v378 = vunpack.c.l.b16 %v67
    %v379 = vunpack.c.l.b16 %v68
    %v380 = vunpack.c.l.b16 %v69
    %v381 = vunpack.c.l.b16 %v70
    %v382 = vunpack.c.l.b16 %v71
    %v383 = vunpack.c.l.b16 %v72
    %v384 = vunpack.c.l.b16 %v73
    %v385 = vunpack.c.l.b16 %v74
    %v386 = vunpack.c.l.b16 %v75
    %v387 = vunpack.c.l.b16 %v76
    %v388 = vunpack.c.l.b16 %v77
    %v389 = vpack.c.b16 %v374, %v373
    %v390 = vpack.c.b16 %v376, %v375
    %v391 = vpack.c.b16 %v378, %v377
    %v392 = vpack.c.b16 %v380, %v379
    %v393 = vpack.c.b16 %v382, %v381
    %v394 = vpack.c.b16 %v384, %v383
    %v395 = vpack.c.b16 %v386, %v385
    %v396 = vpack.c.b16 %v388, %v387
    %405 = vmatpush.bf16.msra.mxu0 %v396
    %406 = vmatpush.bf16.msra.mxu0 %v395
    %407 = vmatpush.bf16.msra.mxu0 %v394
    %408 = vmatpush.bf16.msra.mxu0 %v393
    %409 = vmatpush.bf16.msra.mxu0 %v392
    %410 = vmatpush.bf16.msra.mxu0 %v391
    %411 = vmatpush.bf16.msra.mxu0 %v390
    %412 = vmatpush.bf16.msra.mxu0 %v389
    %413 = vmatmul.bf16.gmra.mxu0 %v309
    %v414 = vpop.f32.mrf.mxu0
    %v415 = vadd.f32 0.0, %v414
    %v416 = vpop.f32.mrf.mxu0
    %v417 = vadd.f32 0.0, %v416
    %418 = vmatmul.bf16.gmra.mxu0 %v326
    %v419 = vpop.f32.mrf.mxu0
    %v420 = vadd.f32 0.0, %v419
    %v421 = vpop.f32.mrf.mxu0
    %v422 = vadd.f32 0.0, %v421
    %423 = vmatmul.bf16.gmra.mxu0 %v343
    %v424 = vpop.f32.mrf.mxu0
    %v425 = vadd.f32 0.0, %v424
    %v426 = vpop.f32.mrf.mxu0
    %v427 = vadd.f32 0.0, %v426
    %428 = vmatmul.bf16.gmra.mxu0 %v352
    %v429 = vpop.f32.mrf.mxu0
    %v430 = vadd.f32 0.0, %v429
    %v431 = vpop.f32.mrf.mxu0
    %432 = vdwg.mxu0
    %v433 = vunpack.i.l.s16 %v97
    %v434 = vunpack.i.l.s16 %v113
    %v435 = vunpack.i.l.s16 %v126
    %v436 = vunpack.i.l.s16 %v139
    %v437 = vunpack.i.l.s16 %v152
    %v438 = vunpack.i.l.s16 %v165
    %v439 = vunpack.i.l.s16 %v178
    %v440 = vunpack.i.l.s16 %v191
    %v441 = vpack.i.b16 %v202, %v433
    %v442 = vpack.i.b16 %v204, %v203
    %v443 = vpack.i.b16 %v206, %v205
    %v444 = vpack.i.b16 %v434, %v207
    %v445 = vpack.i.b16 %v210, %v209
    %v446 = vpack.i.b16 %v212, %v211
    %v447 = vpack.i.b16 %v214, %v213
    %v448 = vpack.i.b16 %v216, %v435
    %v449 = vpack.i.b16 %v218, %v217
    %v450 = vpack.i.b16 %v220, %v219
    %v451 = vpack.i.b16 %v436, %v221
    %v452 = vpack.i.b16 %v224, %v223
    %v453 = vpack.i.b16 %v226, %v225
    %v454 = vpack.i.b16 %v228, %v227
    %v455 = vpack.i.b16 %v230, %v437
    %v456 = vpack.i.b16 %v232, %v231
    %v457 = vpack.i.b16 %v234, %v233
    %v458 = vpack.i.b16 %v438, %v235
    %v459 = vpack.i.b16 %v238, %v237
    %v460 = vpack.i.b16 %v240, %v239
    %v461 = vpack.i.b16 %v242, %v241
    %v462 = vpack.i.b16 %v244, %v439
    %v463 = vpack.i.b16 %v246, %v245
    %v464 = vpack.i.b16 %v248, %v247
    %v465 = vpack.i.b16 %v440, %v249
    %v466 = vpack.i.b16 %v252, %v251
    %v467 = vpack.i.b16 %v254, %v253
    %v468 = vpack.i.b16 %v256, %v255
    %470 = vst [vmem:[#allocation1] ss:$9 sm:$0xff] %v441
    %s472 = scalar_lea.vmem [#allocation1], 1
    %473 = vst [vmem:[%s472] ss:$9 sm:$0xff] %v442
    %s475 = scalar_lea.vmem [#allocation1], 2
    %476 = vst [vmem:[%s475] ss:$9 sm:$0xff] %v443
    %s478 = scalar_lea.vmem [#allocation1], 3
    %479 = vst [vmem:[%s478] ss:$9 sm:$0xff] %v444
    %s481 = scalar_lea.vmem [#allocation1], 4
    %482 = vst [vmem:[%s481] ss:$9 sm:$0xff] %v445
    %s484 = scalar_lea.vmem [#allocation1], 5
    %485 = vst [vmem:[%s484] ss:$9 sm:$0xff] %v446
    %s487 = scalar_lea.vmem [#allocation1], 6
    %488 = vst [vmem:[%s487] ss:$9 sm:$0xff] %v447
    %s490 = scalar_lea.vmem [#allocation1], 7
    %491 = vst [vmem:[%s490] ss:$9 sm:$0xff] %v448
    %v492 = vld [vmem:[#allocation1] sm:$0xff]
    %494 = vst [vmem:[#allocation1] ss:$9 sm:$0xff] %v449
    %496 = vst [vmem:[%s472] ss:$9 sm:$0xff] %v450
    %498 = vst [vmem:[%s475] ss:$9 sm:$0xff] %v451
    %500 = vst [vmem:[%s478] ss:$9 sm:$0xff] %v452
    %502 = vst [vmem:[%s481] ss:$9 sm:$0xff] %v453
    %504 = vst [vmem:[%s484] ss:$9 sm:$0xff] %v454
    %506 = vst [vmem:[%s487] ss:$9 sm:$0xff] %v455
    %508 = vst [vmem:[%s490] ss:$9 sm:$0xff] %v456
    %v509 = vld [vmem:[#allocation1] sm:$0xff]
    %511 = vst [vmem:[#allocation1] ss:$9 sm:$0xff] %v457
    %513 = vst [vmem:[%s472] ss:$9 sm:$0xff] %v458
    %515 = vst [vmem:[%s475] ss:$9 sm:$0xff] %v459
    %517 = vst [vmem:[%s478] ss:$9 sm:$0xff] %v460
    %519 = vst [vmem:[%s481] ss:$9 sm:$0xff] %v461
    %521 = vst [vmem:[%s484] ss:$9 sm:$0xff] %v462
    %523 = vst [vmem:[%s487] ss:$9 sm:$0xff] %v463
    %525 = vst [vmem:[%s490] ss:$9 sm:$0xff] %v464
    %v526 = vld [vmem:[#allocation1] sm:$0xff]
    %528 = vst [vmem:[#allocation1] ss:$9 sm:$0xff] %v465
    %530 = vst [vmem:[%s472] ss:$9 sm:$0xff] %v466
    %532 = vst [vmem:[%s475] ss:$9 sm:$0xff] %v467
    %534 = vst [vmem:[%s478] ss:$9 sm:$0xff] %v468
    %v535 = vld [vmem:[#allocation1] sm:$0xff]
    %v556 = vunpack.c.l.b16 %v45
    %v557 = vunpack.c.l.b16 %v46
    %v558 = vunpack.c.l.b16 %v47
    %v559 = vunpack.c.l.b16 %v48
    %v560 = vunpack.c.l.b16 %v49
    %v561 = vunpack.c.l.b16 %v50
    %v562 = vunpack.c.l.b16 %v51
    %v563 = vunpack.c.l.b16 %v52
    %v564 = vunpack.c.l.b16 %v53
    %v565 = vunpack.c.l.b16 %v54
    %v566 = vunpack.c.l.b16 %v55
    %v567 = vunpack.c.l.b16 %v56
    %v568 = vunpack.c.l.b16 %v57
    %v569 = vunpack.c.l.b16 %v58
    %v570 = vunpack.c.l.b16 %v59
    %v571 = vunpack.c.l.b16 %v60
    %v572 = vpack.c.b16 %v557, %v556
    %v573 = vpack.c.b16 %v559, %v558
    %v574 = vpack.c.b16 %v561, %v560
    %v575 = vpack.c.b16 %v563, %v562
    %v576 = vpack.c.b16 %v565, %v564
    %v577 = vpack.c.b16 %v567, %v566
    %v578 = vpack.c.b16 %v569, %v568
    %v579 = vpack.c.b16 %v571, %v570
    %588 = vmatpush.bf16.msra.mxu0 %v579
    %589 = vmatpush.bf16.msra.mxu0 %v578
    %590 = vmatpush.bf16.msra.mxu0 %v577
    %591 = vmatpush.bf16.msra.mxu0 %v576
    %592 = vmatpush.bf16.msra.mxu0 %v575
    %593 = vmatpush.bf16.msra.mxu0 %v574
    %594 = vmatpush.bf16.msra.mxu0 %v573
    %595 = vmatpush.bf16.msra.mxu0 %v572
    %596 = vmatmul.bf16.gmra.mxu0 %v492
    %v597 = vpop.f32.mrf.mxu0
    %v598 = vadd.f32 %v415, %v597
    %v599 = vpop.f32.mrf.mxu0
    %v600 = vadd.f32 %v417, %v599
    %601 = vmatmul.bf16.gmra.mxu0 %v509
    %v602 = vpop.f32.mrf.mxu0
    %v603 = vadd.f32 %v420, %v602
    %v604 = vpop.f32.mrf.mxu0
    %v605 = vadd.f32 %v422, %v604
    %606 = vmatmul.bf16.gmra.mxu0 %v526
    %v607 = vpop.f32.mrf.mxu0
    %v608 = vadd.f32 %v425, %v607
    %v609 = vpop.f32.mrf.mxu0
    %v610 = vadd.f32 %v427, %v609
    %611 = vmatmul.bf16.gmra.mxu0 %v535
    %v612 = vpop.f32.mrf.mxu0
    %v613 = vadd.f32 %v430, %v612
    %v614 = vpop.f32.mrf.mxu0
    %615 = vdwg.mxu0
    %v623 = vrot.slane %v598, 1
    %v624 = vrot.slane %v598, 2
    %v625 = vrot.slane %v598, 3
    %v626 = vrot.slane %v598, 4
    %v627 = vrot.slane %v598, 5
    %v628 = vrot.slane %v598, 6
    %v629 = vrot.slane %v598, 7
    %v630 = vrot.slane %v600, 1
    %v631 = vrot.slane %v600, 2
    %v632 = vrot.slane %v600, 3
    %v633 = vrot.slane %v600, 4
    %v634 = vrot.slane %v600, 5
    %v635 = vrot.slane %v600, 6
    %v636 = vrot.slane %v600, 7
    %v637 = vrot.slane %v603, 1
    %v638 = vrot.slane %v603, 2
    %v639 = vrot.slane %v603, 3
    %v640 = vrot.slane %v603, 4
    %v641 = vrot.slane %v603, 5
    %v642 = vrot.slane %v603, 6
    %v643 = vrot.slane %v603, 7
    %v644 = vrot.slane %v605, 1
    %v645 = vrot.slane %v605, 2
    %v646 = vrot.slane %v605, 3
    %v647 = vrot.slane %v605, 4
    %v648 = vrot.slane %v605, 5
    %v649 = vrot.slane %v605, 6
    %v650 = vrot.slane %v605, 7
    %v651 = vrot.slane %v608, 1
    %v652 = vrot.slane %v608, 2
    %v653 = vrot.slane %v608, 3
    %v654 = vrot.slane %v608, 4
    %v655 = vrot.slane %v608, 5
    %v656 = vrot.slane %v608, 6
    %v657 = vrot.slane %v608, 7
    %v658 = vrot.slane %v610, 1
    %v659 = vrot.slane %v610, 2
    %v660 = vrot.slane %v610, 3
    %v661 = vrot.slane %v610, 4
    %v662 = vrot.slane %v610, 5
    %v663 = vrot.slane %v610, 6
    %v664 = vrot.slane %v610, 7
    %v665 = vrot.slane %v613, 1
    %v666 = vrot.slane %v613, 2
    %v667 = vrot.slane %v613, 3
    %v668 = vrot.slane %v613, 4
    %v669 = vrot.slane %v613, 5
    %v670 = vrot.slane %v613, 6
    %v671 = vrot.slane %v613, 7
    %672 = vst [vmem:[#allocation1] ss:$9 sm:$0xff] %v598
    %s673 = scalar_lea.vmem [#allocation1], 1
    %674 = vst [vmem:[%s673] ss:$9 sm:$0xff] %v623
    %s675 = scalar_lea.vmem [#allocation1], 2
    %676 = vst [vmem:[%s675] ss:$9 sm:$0xff] %v624
    %s677 = scalar_lea.vmem [#allocation1], 3
    %678 = vst [vmem:[%s677] ss:$9 sm:$0xff] %v625
    %s679 = scalar_lea.vmem [#allocation1], 4
    %680 = vst [vmem:[%s679] ss:$9 sm:$0xff] %v626
    %s681 = scalar_lea.vmem [#allocation1], 5
    %682 = vst [vmem:[%s681] ss:$9 sm:$0xff] %v627
    %s683 = scalar_lea.vmem [#allocation1], 6
    %684 = vst [vmem:[%s683] ss:$9 sm:$0xff] %v628
    %v685 = vld [vmem:[#allocation1] sm:$0xff]
    %686 = vst [vmem:[#allocation1] ss:$9 sm:$0xff] %v629
    %687 = vst [vmem:[%s673] ss:$9 sm:$0xff] %v600
    %688 = vst [vmem:[%s675] ss:$9 sm:$0xff] %v630
    %689 = vst [vmem:[%s677] ss:$9 sm:$0xff] %v631
    %690 = vst [vmem:[%s679] ss:$9 sm:$0xff] %v632
    %691 = vst [vmem:[%s681] ss:$9 sm:$0xff] %v633
    %692 = vst [vmem:[%s683] ss:$9 sm:$0xff] %v634
    %v693 = vld [vmem:[#allocation1] sm:$0xff]
    %694 = vst [vmem:[#allocation1] ss:$9 sm:$0xff] %v635
    %695 = vst [vmem:[%s673] ss:$9 sm:$0xff] %v636
    %696 = vst [vmem:[%s675] ss:$9 sm:$0xff] %v603
    %697 = vst [vmem:[%s677] ss:$9 sm:$0xff] %v637
    %698 = vst [vmem:[%s679] ss:$9 sm:$0xff] %v638
    %699 = vst [vmem:[%s681] ss:$9 sm:$0xff] %v639
    %700 = vst [vmem:[%s683] ss:$9 sm:$0xff] %v640
    %v701 = vld [vmem:[#allocation1] sm:$0xff]
    %702 = vst [vmem:[#allocation1] ss:$9 sm:$0xff] %v641
    %703 = vst [vmem:[%s673] ss:$9 sm:$0xff] %v642
    %704 = vst [vmem:[%s675] ss:$9 sm:$0xff] %v643
    %705 = vst [vmem:[%s677] ss:$9 sm:$0xff] %v605
    %706 = vst [vmem:[%s679] ss:$9 sm:$0xff] %v644
    %707 = vst [vmem:[%s681] ss:$9 sm:$0xff] %v645
    %708 = vst [vmem:[%s683] ss:$9 sm:$0xff] %v646
    %v709 = vld [vmem:[#allocation1] sm:$0xff]
    %710 = vst [vmem:[#allocation1] ss:$9 sm:$0xff] %v647
    %711 = vst [vmem:[%s673] ss:$9 sm:$0xff] %v648
    %712 = vst [vmem:[%s675] ss:$9 sm:$0xff] %v649
    %713 = vst [vmem:[%s677] ss:$9 sm:$0xff] %v650
    %714 = vst [vmem:[%s679] ss:$9 sm:$0xff] %v608
    %715 = vst [vmem:[%s681] ss:$9 sm:$0xff] %v651
    %716 = vst [vmem:[%s683] ss:$9 sm:$0xff] %v652
    %v717 = vld [vmem:[#allocation1] sm:$0xff]
    %718 = vst [vmem:[#allocation1] ss:$9 sm:$0xff] %v653
    %719 = vst [vmem:[%s673] ss:$9 sm:$0xff] %v654
    %720 = vst [vmem:[%s675] ss:$9 sm:$0xff] %v655
    %721 = vst [vmem:[%s677] ss:$9 sm:$0xff] %v656
    %722 = vst [vmem:[%s679] ss:$9 sm:$0xff] %v657
    %723 = vst [vmem:[%s681] ss:$9 sm:$0xff] %v610
    %724 = vst [vmem:[%s683] ss:$9 sm:$0xff] %v658
    %v725 = vld [vmem:[#allocation1] sm:$0xff]
    %726 = vst [vmem:[#allocation1] ss:$9 sm:$0xff] %v659
    %727 = vst [vmem:[%s673] ss:$9 sm:$0xff] %v660
    %728 = vst [vmem:[%s675] ss:$9 sm:$0xff] %v661
    %729 = vst [vmem:[%s677] ss:$9 sm:$0xff] %v662
    %730 = vst [vmem:[%s679] ss:$9 sm:$0xff] %v663
    %731 = vst [vmem:[%s681] ss:$9 sm:$0xff] %v664
    %732 = vst [vmem:[%s683] ss:$9 sm:$0xff] %v613
    %v733 = vld [vmem:[#allocation1] sm:$0xff]
    %734 = vst [vmem:[#allocation1] ss:$9 sm:$0xff] %v665
    %735 = vst [vmem:[%s673] ss:$9 sm:$0xff] %v666
    %736 = vst [vmem:[%s675] ss:$9 sm:$0xff] %v667
    %737 = vst [vmem:[%s677] ss:$9 sm:$0xff] %v668
    %738 = vst [vmem:[%s679] ss:$9 sm:$0xff] %v669
    %739 = vst [vmem:[%s681] ss:$9 sm:$0xff] %v670
    %740 = vst [vmem:[%s683] ss:$9 sm:$0xff] %v671
    %v741 = vld [vmem:[#allocation1] sm:$0xff]
    %vm750 = vcmask 1046528
    %v751 = vsel %vm750, %v685, -inf
    %v752 = vrot.slane %v751, 4
    %v753 = vmax.f32 %v751, %v752
    %v754 = vrot.slane %v753, 2
    %v755 = vmax.f32 %v753, %v754
    %v756 = vrot.slane %v755, 1
    %v757 = vmax.f32 %v755, %v756
    %v758 = vsel %vm750, %v693, -inf
    %v759 = vrot.slane %v758, 4
    %v760 = vmax.f32 %v758, %v759
    %v761 = vrot.slane %v760, 2
    %v762 = vmax.f32 %v760, %v761
    %v763 = vrot.slane %v762, 1
    %v764 = vmax.f32 %v762, %v763
    %v765 = vsel %vm750, %v701, -inf
    %v766 = vrot.slane %v765, 4
    %v767 = vmax.f32 %v765, %v766
    %v768 = vrot.slane %v767, 2
    %v769 = vmax.f32 %v767, %v768
    %v770 = vrot.slane %v769, 1
    %v771 = vmax.f32 %v769, %v770
    %v772 = vsel %vm750, %v709, -inf
    %v773 = vrot.slane %v772, 4
    %v774 = vmax.f32 %v772, %v773
    %v775 = vrot.slane %v774, 2
    %v776 = vmax.f32 %v774, %v775
    %v777 = vrot.slane %v776, 1
    %v778 = vmax.f32 %v776, %v777
    %v779 = vsel %vm750, %v717, -inf
    %v780 = vrot.slane %v779, 4
    %v781 = vmax.f32 %v779, %v780
    %v782 = vrot.slane %v781, 2
    %v783 = vmax.f32 %v781, %v782
    %v784 = vrot.slane %v783, 1
    %v785 = vmax.f32 %v783, %v784
    %v786 = vsel %vm750, %v725, -inf
    %v787 = vrot.slane %v786, 4
    %v788 = vmax.f32 %v786, %v787
    %v789 = vrot.slane %v788, 2
    %v790 = vmax.f32 %v788, %v789
    %v791 = vrot.slane %v790, 1
    %v792 = vmax.f32 %v790, %v791
    %v793 = vsel %vm750, %v733, -inf
    %v794 = vrot.slane %v793, 4
    %v795 = vmax.f32 %v793, %v794
    %v796 = vrot.slane %v795, 2
    %v797 = vmax.f32 %v795, %v796
    %v798 = vrot.slane %v797, 1
    %v799 = vmax.f32 %v797, %v798
    %v800 = vsel %vm750, %v741, -inf
    %v801 = vrot.slane %v800, 4
    %v802 = vmax.f32 %v800, %v801
    %v803 = vrot.slane %v802, 2
    %v804 = vmax.f32 %v802, %v803
    %v805 = vrot.slane %v804, 1
    %v806 = vmax.f32 %v804, %v805
    %v807 = vperm.slane %v44, 0
    %v808 = vadd.f32 %v757, %v807
    %v809 = vadd.f32 %v764, %v807
    %v810 = vadd.f32 %v771, %v807
    %v811 = vadd.f32 %v778, %v807
    %v812 = vadd.f32 %v785, %v807
    %v813 = vadd.f32 %v792, %v807
    %v814 = vadd.f32 %v799, %v807
    %v815 = vadd.f32 %v806, %v807
    %v816 = vmax.f32 %v808, 0.0
    %v817 = vmax.f32 %v809, 0.0
    %v818 = vmax.f32 %v810, 0.0
    %v819 = vmax.f32 %v811, 0.0
    %v820 = vmax.f32 %v812, 0.0
    %v821 = vmax.f32 %v813, 0.0
    %v822 = vmax.f32 %v814, 0.0
    %v823 = vmax.f32 %v815, 0.0
    %v824 = vpack.c.bf16 %v816, %v816
    %v825 = vpack.c.bf16 %v817, %v817
    %v826 = vpack.c.bf16 %v818, %v818
    %v827 = vpack.c.bf16 %v819, %v819
    %v828 = vpack.c.bf16 %v820, %v820
    %v829 = vpack.c.bf16 %v821, %v821
    %v830 = vpack.c.bf16 %v822, %v822
    %v831 = vpack.c.bf16 %v823, %v823
    %s832 = scalar_lea.vmem [#allocation2], 128
    %v833 = vld [vmem:[%s832] sm:$0xf]
    %v834 = vld [vmem:[%s832 + $0x4] sm:$0xf]
    %v835 = vld [vmem:[%s832 + $0x8] sm:$0xf]
    %v836 = vld [vmem:[%s832 + $0xc] sm:$0xf]
    %v837 = vld [vmem:[%s832 + $0x10] sm:$0xf]
    %v838 = vld [vmem:[%s832 + $0x14] sm:$0xf]
    %v839 = vld [vmem:[%s832 + $0x18] sm:$0xf]
    %v840 = vld [vmem:[%s832 + $0x1c] sm:$0xf]
    %v841 = vld [vmem:[%s832 + $0x20] sm:$0xf]
    %v842 = vld [vmem:[%s832 + $0x24] sm:$0xf]
    %v843 = vld [vmem:[%s832 + $0x28] sm:$0xf]
    %v844 = vld [vmem:[%s832 + $0x2c] sm:$0xf]
    %v845 = vld [vmem:[%s832 + $0x30] sm:$0xf]
    %v846 = vld [vmem:[%s832 + $0x34] sm:$0xf]
    %v847 = vld [vmem:[%s832 + $0x38] sm:$0xf]
    %v848 = vld [vmem:[%s832 + $0x3c] sm:$0xf]
    %s849 = scalar_lea.vmem [#allocation2], 192
    %v850 = vld [vmem:[%s849] sm:$0xf]
    %v851 = vld [vmem:[%s849 + $0x4] sm:$0xf]
    %v852 = vld [vmem:[%s849 + $0x8] sm:$0xf]
    %v853 = vld [vmem:[%s849 + $0xc] sm:$0xf]
    %v854 = vld [vmem:[%s849 + $0x10] sm:$0xf]
    %v855 = vld [vmem:[%s849 + $0x14] sm:$0xf]
    %v856 = vld [vmem:[%s849 + $0x18] sm:$0xf]
    %v857 = vld [vmem:[%s849 + $0x1c] sm:$0xf]
    %v858 = vld [vmem:[%s849 + $0x20] sm:$0xf]
    %v859 = vld [vmem:[%s849 + $0x24] sm:$0xf]
    %v860 = vld [vmem:[%s849 + $0x28] sm:$0xf]
    %v861 = vld [vmem:[%s849 + $0x2c] sm:$0xf]
    %v862 = vld [vmem:[%s849 + $0x30] sm:$0xf]
    %v863 = vld [vmem:[%s849 + $0x34] sm:$0xf]
    %v864 = vld [vmem:[%s849 + $0x38] sm:$0xf]
    %v865 = vld [vmem:[%s849 + $0x3c] sm:$0xf]
    %vm866 = vsmask.f32 256
    %vm867 = vsmask.f32 1284
    %vm868 = vmor %vm866, %vm867
    %vm869 = vsmask.f32 2312
    %vm870 = vmor %vm868, %vm869
    %vm871 = vsmask.f32 3340
    %vm872 = vmor %vm870, %vm871
    %vm873 = vsmask.f32 4368
    %vm874 = vmor %vm872, %vm873
    %vm875 = vsmask.f32 5396
    %vm876 = vmor %vm874, %vm875
    %vm877 = vsmask.f32 6424
    %vm878 = vmor %vm876, %vm877
    %vm879 = vsmask.f32 7452
    %vm880 = vmor %vm878, %vm879
    %v881 = vshrl.u32 %v97, 16
    %v883 = vrot.slane %v881, 7
    %v884 = vrot.slane %v883, 1
    %v886 = vshll.u32 %v102, 16
    %v888 = vsel %vm880, %v884, %v886
    %v889 = vshrl.u32 %v102, 16
    %v891 = vrot.slane %v889, 7
    %v892 = vrot.slane %v891, 1
    %v894 = vshll.u32 %v106, 16
    %v896 = vsel %vm880, %v892, %v894
    %v897 = vshrl.u32 %v106, 16
    %v899 = vrot.slane %v897, 7
    %v900 = vrot.slane %v899, 1
    %v902 = vshll.u32 %v110, 16
    %v904 = vsel %vm880, %v900, %v902
    %v905 = vshrl.u32 %v113, 16
    %v907 = vrot.slane %v905, 7
    %v908 = vrot.slane %v907, 1
    %v910 = vshll.u32 %v117, 16
    %v912 = vsel %vm880, %v908, %v910
    %v913 = vshrl.u32 %v117, 16
    %v915 = vrot.slane %v913, 7
    %v916 = vrot.slane %v915, 1
    %v918 = vshll.u32 %v120, 16
    %v920 = vsel %vm880, %v916, %v918
    %v921 = vshrl.u32 %v120, 16
    %v923 = vrot.slane %v921, 7
    %v924 = vrot.slane %v923, 1
    %v926 = vshll.u32 %v123, 16
    %v928 = vsel %vm880, %v924, %v926
    %v929 = vshrl.u32 %v126, 16
    %v931 = vrot.slane %v929, 7
    %v932 = vrot.slane %v931, 1
    %v934 = vshll.u32 %v130, 16
    %v936 = vsel %vm880, %v932, %v934
    %v937 = vshrl.u32 %v130, 16
    %v939 = vrot.slane %v937, 7
    %v940 = vrot.slane %v939, 1
    %v942 = vshll.u32 %v133, 16
    %v944 = vsel %vm880, %v940, %v942
    %v945 = vshrl.u32 %v133, 16
    %v947 = vrot.slane %v945, 7
    %v948 = vrot.slane %v947, 1
    %v950 = vshll.u32 %v136, 16
    %v952 = vsel %vm880, %v948, %v950
    %v953 = vshrl.u32 %v139, 16
    %v955 = vrot.slane %v953, 7
    %v956 = vrot.slane %v955, 1
    %v958 = vshll.u32 %v143, 16
    %v960 = vsel %vm880, %v956, %v958
    %v961 = vshrl.u32 %v143, 16
    %v963 = vrot.slane %v961, 7
    %v964 = vrot.slane %v963, 1
    %v966 = vshll.u32 %v146, 16
    %v968 = vsel %vm880, %v964, %v966
    %v969 = vshrl.u32 %v146, 16
    %v971 = vrot.slane %v969, 7
    %v972 = vrot.slane %v971, 1
    %v974 = vshll.u32 %v149, 16
    %v976 = vsel %vm880, %v972, %v974
    %v977 = vshrl.u32 %v152, 16
    %v979 = vrot.slane %v977, 7
    %v980 = vrot.slane %v979, 1
    %v982 = vshll.u32 %v156, 16
    %v984 = vsel %vm880, %v980, %v982
    %v985 = vshrl.u32 %v156, 16
    %v987 = vrot.slane %v985, 7
    %v988 = vrot.slane %v987, 1
    %v990 = vshll.u32 %v159, 16
    %v992 = vsel %vm880, %v988, %v990
    %v993 = vshrl.u32 %v159, 16
    %v995 = vrot.slane %v993, 7
    %v996 = vrot.slane %v995, 1
    %v998 = vshll.u32 %v162, 16
    %v1000 = vsel %vm880, %v996, %v998
    %v1001 = vshrl.u32 %v165, 16
    %v1003 = vrot.slane %v1001, 7
    %v1004 = vrot.slane %v1003, 1
    %v1006 = vshll.u32 %v169, 16
    %v1008 = vsel %vm880, %v1004, %v1006
    %v1009 = vshrl.u32 %v169, 16
    %v1011 = vrot.slane %v1009, 7
    %v1012 = vrot.slane %v1011, 1
    %v1014 = vshll.u32 %v172, 16
    %v1016 = vsel %vm880, %v1012, %v1014
    %v1017 = vshrl.u32 %v172, 16
    %v1019 = vrot.slane %v1017, 7
    %v1020 = vrot.slane %v1019, 1
    %v1022 = vshll.u32 %v175, 16
    %v1024 = vsel %vm880, %v1020, %v1022
    %v1025 = vshrl.u32 %v178, 16
    %v1027 = vrot.slane %v1025, 7
    %v1028 = vrot.slane %v1027, 1
    %v1030 = vshll.u32 %v182, 16
    %v1032 = vsel %vm880, %v1028, %v1030
    %v1033 = vshrl.u32 %v182, 16
    %v1035 = vrot.slane %v1033, 7
    %v1036 = vrot.slane %v1035, 1
    %v1038 = vshll.u32 %v185, 16
    %v1040 = vsel %vm880, %v1036, %v1038
    %v1041 = vshrl.u32 %v185, 16
    %v1043 = vrot.slane %v1041, 7
    %v1044 = vrot.slane %v1043, 1
    %v1046 = vshll.u32 %v188, 16
    %v1048 = vsel %vm880, %v1044, %v1046
    %v1049 = vshrl.u32 %v191, 16
    %v1051 = vrot.slane %v1049, 7
    %v1052 = vrot.slane %v1051, 1
    %v1054 = vshll.u32 %v195, 16
    %v1056 = vsel %vm880, %v1052, %v1054
    %v1057 = vshrl.u32 %v195, 16
    %v1059 = vrot.slane %v1057, 7
    %v1060 = vrot.slane %v1059, 1
    %v1062 = vshll.u32 %v198, 16
    %v1064 = vsel %vm880, %v1060, %v1062
    %v1065 = vshrl.u32 %v198, 16
    %v1067 = vrot.slane %v1065, 7
    %v1068 = vrot.slane %v1067, 1
    %v1070 = vshll.u32 %v201, 16
    %v1072 = vsel %vm880, %v1068, %v1070
    %1074 = vst [vmem:[#allocation1] ss:$9 sm:$0xff] %v888
    %s1076 = scalar_lea.vmem [#allocation1], 1
    %1077 = vst [vmem:[%s1076] ss:$9 sm:$0xff] %v896
    %s1079 = scalar_lea.vmem [#allocation1], 2
    %1080 = vst [vmem:[%s1079] ss:$9 sm:$0xff] %v904
    %s1082 = scalar_lea.vmem [#allocation1], 3
    %1083 = vst [vmem:[%s1082] ss:$9 sm:$0xff] %v912
    %s1085 = scalar_lea.vmem [#allocation1], 4
    %1086 = vst [vmem:[%s1085] ss:$9 sm:$0xff] %v920
    %s1088 = scalar_lea.vmem [#allocation1], 5
    %1089 = vst [vmem:[%s1088] ss:$9 sm:$0xff] %v928
    %s1091 = scalar_lea.vmem [#allocation1], 6
    %1092 = vst [vmem:[%s1091] ss:$9 sm:$0xff] %v936
    %s1094 = scalar_lea.vmem [#allocation1], 7
    %1095 = vst [vmem:[%s1094] ss:$9 sm:$0xff] %v944
    %v1096 = vld [vmem:[#allocation1] sm:$0xff]
    %1098 = vst [vmem:[#allocation1] ss:$9 sm:$0xff] %v952
    %1100 = vst [vmem:[%s1076] ss:$9 sm:$0xff] %v960
    %1102 = vst [vmem:[%s1079] ss:$9 sm:$0xff] %v968
    %1104 = vst [vmem:[%s1082] ss:$9 sm:$0xff] %v976
    %1106 = vst [vmem:[%s1085] ss:$9 sm:$0xff] %v984
    %1108 = vst [vmem:[%s1088] ss:$9 sm:$0xff] %v992
    %1110 = vst [vmem:[%s1091] ss:$9 sm:$0xff] %v1000
    %1112 = vst [vmem:[%s1094] ss:$9 sm:$0xff] %v1008
    %v1113 = vld [vmem:[#allocation1] sm:$0xff]
    %1115 = vst [vmem:[#allocation1] ss:$9 sm:$0xff] %v1016
    %1117 = vst [vmem:[%s1076] ss:$9 sm:$0xff] %v1024
    %1119 = vst [vmem:[%s1079] ss:$9 sm:$0xff] %v1032
    %1121 = vst [vmem:[%s1082] ss:$9 sm:$0xff] %v1040
    %1123 = vst [vmem:[%s1085] ss:$9 sm:$0xff] %v1048
    %1125 = vst [vmem:[%s1088] ss:$9 sm:$0xff] %v1056
    %1127 = vst [vmem:[%s1091] ss:$9 sm:$0xff] %v1064
    %1129 = vst [vmem:[%s1094] ss:$9 sm:$0xff] %v1072
    %v1130 = vld [vmem:[#allocation1] sm:$0xff]
    %v1150 = vunpack.c.l.b16 %v850
    %v1151 = vunpack.c.l.b16 %v851
    %v1152 = vunpack.c.l.b16 %v852
    %v1153 = vunpack.c.l.b16 %v853
    %v1154 = vunpack.c.l.b16 %v854
    %v1155 = vunpack.c.l.b16 %v855
    %v1156 = vunpack.c.l.b16 %v856
    %v1157 = vunpack.c.l.b16 %v857
    %v1158 = vunpack.c.l.b16 %v858
    %v1159 = vunpack.c.l.b16 %v859
    %v1160 = vunpack.c.l.b16 %v860
    %v1161 = vunpack.c.l.b16 %v861
    %v1162 = vunpack.c.l.b16 %v862
    %v1163 = vunpack.c.l.b16 %v863
    %v1164 = vunpack.c.l.b16 %v864
    %v1165 = vunpack.c.l.b16 %v865
    %v1166 = vpack.c.b16 %v1151, %v1150
    %v1167 = vpack.c.b16 %v1153, %v1152
    %v1168 = vpack.c.b16 %v1155, %v1154
    %v1169 = vpack.c.b16 %v1157, %v1156
    %v1170 = vpack.c.b16 %v1159, %v1158
    %v1171 = vpack.c.b16 %v1161, %v1160
    %v1172 = vpack.c.b16 %v1163, %v1162
    %v1173 = vpack.c.b16 %v1165, %v1164
    %1182 = vmatpush.bf16.msra.mxu0 %v1173
    %1183 = vmatpush.bf16.msra.mxu0 %v1172
    %1184 = vmatpush.bf16.msra.mxu0 %v1171
    %1185 = vmatpush.bf16.msra.mxu0 %v1170
    %1186 = vmatpush.bf16.msra.mxu0 %v1169
    %1187 = vmatpush.bf16.msra.mxu0 %v1168
    %1188 = vmatpush.bf16.msra.mxu0 %v1167
    %1189 = vmatpush.bf16.msra.mxu0 %v1166
    %1190 = vmatmul.bf16.gmra.mxu0 %v1096
    %v1191 = vpop.f32.mrf.mxu0
    %v1192 = vadd.f32 0.0, %v1191
    %v1193 = vpop.f32.mrf.mxu0
    %v1194 = vadd.f32 0.0, %v1193
    %1195 = vmatmul.bf16.gmra.mxu0 %v1113
    %v1196 = vpop.f32.mrf.mxu0
    %v1197 = vadd.f32 0.0, %v1196
    %v1198 = vpop.f32.mrf.mxu0
    %v1199 = vadd.f32 0.0, %v1198
    %1200 = vmatmul.bf16.gmra.mxu0 %v1130
    %v1201 = vpop.f32.mrf.mxu0
    %v1202 = vadd.f32 0.0, %v1201
    %v1203 = vpop.f32.mrf.mxu0
    %v1204 = vadd.f32 0.0, %v1203
    %1205 = vdwg.mxu0
    %1206 = vst [vmem:[#allocation1] ss:$9 sm:$0xff] %v97
    %s1207 = scalar_lea.vmem [#allocation1], 1
    %1208 = vst [vmem:[%s1207] ss:$9 sm:$0xff] %v102
    %s1209 = scalar_lea.vmem [#allocation1], 2
    %1210 = vst [vmem:[%s1209] ss:$9 sm:$0xff] %v106
    %s1211 = scalar_lea.vmem [#allocation1], 3
    %1212 = vst [vmem:[%s1211] ss:$9 sm:$0xff] %v113
    %s1213 = scalar_lea.vmem [#allocation1], 4
    %1214 = vst [vmem:[%s1213] ss:$9 sm:$0xff] %v117
    %s1215 = scalar_lea.vmem [#allocation1], 5
    %1216 = vst [vmem:[%s1215] ss:$9 sm:$0xff] %v120
    %s1217 = scalar_lea.vmem [#allocation1], 6
    %1218 = vst [vmem:[%s1217] ss:$9 sm:$0xff] %v126
    %s1219 = scalar_lea.vmem [#allocation1], 7
    %1220 = vst [vmem:[%s1219] ss:$9 sm:$0xff] %v130
    %v1221 = vld [vmem:[#allocation1] sm:$0xff]
    %1222 = vst [vmem:[#allocation1] ss:$9 sm:$0xff] %v133
    %1223 = vst [vmem:[%s1207] ss:$9 sm:$0xff] %v139
    %1224 = vst [vmem:[%s1209] ss:$9 sm:$0xff] %v143
    %1225 = vst [vmem:[%s1211] ss:$9 sm:$0xff] %v146
    %1226 = vst [vmem:[%s1213] ss:$9 sm:$0xff] %v152
    %1227 = vst [vmem:[%s1215] ss:$9 sm:$0xff] %v156
    %1228 = vst [vmem:[%s1217] ss:$9 sm:$0xff] %v159
    %1229 = vst [vmem:[%s1219] ss:$9 sm:$0xff] %v165
    %v1230 = vld [vmem:[#allocation1] sm:$0xff]
    %1231 = vst [vmem:[#allocation1] ss:$9 sm:$0xff] %v169
    %1232 = vst [vmem:[%s1207] ss:$9 sm:$0xff] %v172
    %1233 = vst [vmem:[%s1209] ss:$9 sm:$0xff] %v178
    %1234 = vst [vmem:[%s1211] ss:$9 sm:$0xff] %v182
    %1235 = vst [vmem:[%s1213] ss:$9 sm:$0xff] %v185
    %1236 = vst [vmem:[%s1215] ss:$9 sm:$0xff] %v191
    %1237 = vst [vmem:[%s1217] ss:$9 sm:$0xff] %v195
    %1238 = vst [vmem:[%s1219] ss:$9 sm:$0xff] %v198
    %v1239 = vld [vmem:[#allocation1] sm:$0xff]
    %v1259 = vunpack.c.l.b16 %v833
    %v1260 = vunpack.c.l.b16 %v834
    %v1261 = vunpack.c.l.b16 %v835
    %v1262 = vunpack.c.l.b16 %v836
    %v1263 = vunpack.c.l.b16 %v837
    %v1264 = vunpack.c.l.b16 %v838
    %v1265 = vunpack.c.l.b16 %v839
    %v1266 = vunpack.c.l.b16 %v840
    %v1267 = vunpack.c.l.b16 %v841
    %v1268 = vunpack.c.l.b16 %v842
    %v1269 = vunpack.c.l.b16 %v843
    %v1270 = vunpack.c.l.b16 %v844
    %v1271 = vunpack.c.l.b16 %v845
    %v1272 = vunpack.c.l.b16 %v846
    %v1273 = vunpack.c.l.b16 %v847
    %v1274 = vunpack.c.l.b16 %v848
    %v1275 = vpack.c.b16 %v1260, %v1259
    %v1276 = vpack.c.b16 %v1262, %v1261
    %v1277 = vpack.c.b16 %v1264, %v1263
    %v1278 = vpack.c.b16 %v1266, %v1265
    %v1279 = vpack.c.b16 %v1268, %v1267
    %v1280 = vpack.c.b16 %v1270, %v1269
    %v1281 = vpack.c.b16 %v1272, %v1271
    %v1282 = vpack.c.b16 %v1274, %v1273
    %1291 = vmatpush.bf16.msra.mxu0 %v1282
    %1292 = vmatpush.bf16.msra.mxu0 %v1281
    %1293 = vmatpush.bf16.msra.mxu0 %v1280
    %1294 = vmatpush.bf16.msra.mxu0 %v1279
    %1295 = vmatpush.bf16.msra.mxu0 %v1278
    %1296 = vmatpush.bf16.msra.mxu0 %v1277
    %1297 = vmatpush.bf16.msra.mxu0 %v1276
    %1298 = vmatpush.bf16.msra.mxu0 %v1275
    %1299 = vmatmul.bf16.gmra.mxu0 %v1221
    %v1300 = vpop.f32.mrf.mxu0
    %v1301 = vadd.f32 %v1192, %v1300
    %v1302 = vpop.f32.mrf.mxu0
    %v1303 = vadd.f32 %v1194, %v1302
    %1304 = vmatmul.bf16.gmra.mxu0 %v1230
    %v1305 = vpop.f32.mrf.mxu0
    %v1306 = vadd.f32 %v1197, %v1305
    %v1307 = vpop.f32.mrf.mxu0
    %v1308 = vadd.f32 %v1199, %v1307
    %1309 = vmatmul.bf16.gmra.mxu0 %v1239
    %v1310 = vpop.f32.mrf.mxu0
    %v1311 = vadd.f32 %v1202, %v1310
    %v1312 = vpop.f32.mrf.mxu0
    %v1313 = vadd.f32 %v1204, %v1312
    %1314 = vdwg.mxu0
    %v1321 = vrot.slane %v1301, 2
    %v1322 = vrot.slane %v1301, 4
    %v1323 = vrot.slane %v1301, 6
    %v1324 = vrot.slane %v1303, 2
    %v1325 = vrot.slane %v1303, 4
    %v1326 = vrot.slane %v1303, 6
    %v1327 = vrot.slane %v1306, 2
    %v1328 = vrot.slane %v1306, 4
    %v1329 = vrot.slane %v1306, 6
    %v1330 = vrot.slane %v1308, 2
    %v1331 = vrot.slane %v1308, 4
    %v1332 = vrot.slane %v1308, 6
    %v1333 = vrot.slane %v1311, 2
    %v1334 = vrot.slane %v1311, 4
    %v1335 = vrot.slane %v1311, 6
    %v1336 = vrot.slane %v1313, 2
    %v1337 = vrot.slane %v1313, 4
    %v1338 = vrot.slane %v1313, 6
    %s1357 = scalar_lea.vmem [#allocation2], 256
    %v1358 = vld [vmem:[%s1357] sm:$0xf]
    %v1359 = vld [vmem:[%s1357 + $0x4] sm:$0xf]
    %v1360 = vld [vmem:[%s1357 + $0x8] sm:$0xf]
    %v1361 = vld [vmem:[%s1357 + $0xc] sm:$0xf]
    %v1362 = vld [vmem:[%s1357 + $0x10] sm:$0xf]
    %v1363 = vld [vmem:[%s1357 + $0x14] sm:$0xf]
    %v1364 = vld [vmem:[%s1357 + $0x18] sm:$0xf]
    %v1365 = vld [vmem:[%s1357 + $0x1c] sm:$0xf]
    %v1366 = vld [vmem:[%s1357 + $0x20] sm:$0xf]
    %v1367 = vld [vmem:[%s1357 + $0x24] sm:$0xf]
    %v1368 = vld [vmem:[%s1357 + $0x28] sm:$0xf]
    %v1369 = vld [vmem:[%s1357 + $0x2c] sm:$0xf]
    %v1370 = vld [vmem:[%s1357 + $0x30] sm:$0xf]
    %v1371 = vld [vmem:[%s1357 + $0x34] sm:$0xf]
    %v1372 = vld [vmem:[%s1357 + $0x38] sm:$0xf]
    %v1373 = vld [vmem:[%s1357 + $0x3c] sm:$0xf]
    %1374 = vst [vmem:[#allocation1] sm:$0xff] %v36
    %s1375 = scalar_lea.vmem [#allocation1], 1
    %v1376 = vld [vmem:[%s1375] ss:$4 sm:$0xff]
    %s1377 = scalar_lea.vmem [#allocation1], 2
    %v1378 = vld [vmem:[%s1377] ss:$4 sm:$0xff]
    %s1379 = scalar_lea.vmem [#allocation1], 3
    %v1380 = vld [vmem:[%s1379] ss:$4 sm:$0xff]
    %1381 = vst [vmem:[#allocation1 + $0x20] sm:$0xff] %v37
    %s1382 = scalar_lea.vmem [#allocation1], 33
    %v1383 = vld [vmem:[%s1382] ss:$4 sm:$0xff]
    %s1384 = scalar_lea.vmem [#allocation1], 34
    %v1385 = vld [vmem:[%s1384] ss:$4 sm:$0xff]
    %s1386 = scalar_lea.vmem [#allocation1], 35
    %v1387 = vld [vmem:[%s1386] ss:$4 sm:$0xff]
    %1388 = vst [vmem:[#allocation1] sm:$0xff] %v38
    %v1389 = vld [vmem:[%s1375] ss:$4 sm:$0xff]
    %v1390 = vld [vmem:[%s1377] ss:$4 sm:$0xff]
    %v1391 = vld [vmem:[%s1379] ss:$4 sm:$0xff]
    %1392 = vst [vmem:[#allocation1 + $0x20] sm:$0xff] %v39
    %v1393 = vld [vmem:[%s1382] ss:$4 sm:$0xff]
    %v1394 = vld [vmem:[%s1384] ss:$4 sm:$0xff]
    %v1395 = vld [vmem:[%s1386] ss:$4 sm:$0xff]
    %1396 = vst [vmem:[#allocation1] sm:$0xff] %v40
    %v1397 = vld [vmem:[%s1375] ss:$4 sm:$0xff]
    %v1398 = vld [vmem:[%s1377] ss:$4 sm:$0xff]
    %v1399 = vld [vmem:[%s1379] ss:$4 sm:$0xff]
    %1400 = vst [vmem:[#allocation1 + $0x20] sm:$0xff] %v41
    %v1401 = vld [vmem:[%s1382] ss:$4 sm:$0xff]
    %v1402 = vld [vmem:[%s1384] ss:$4 sm:$0xff]
    %v1403 = vld [vmem:[%s1386] ss:$4 sm:$0xff]
    %1404 = vst [vmem:[#allocation1] sm:$0xff] %v42
    %v1405 = vld [vmem:[%s1375] ss:$4 sm:$0xff]
    %v1406 = vld [vmem:[%s1377] ss:$4 sm:$0xff]
    %v1407 = vld [vmem:[%s1379] ss:$4 sm:$0xff]
    %1408 = vst [vmem:[#allocation1 + $0x20] sm:$0xff] %v43
    %v1409 = vld [vmem:[%s1382] ss:$4 sm:$0xff]
    %v1410 = vld [vmem:[%s1384] ss:$4 sm:$0xff]
    %v1411 = vld [vmem:[%s1386] ss:$4 sm:$0xff]
    %1412 = vst [vmem:[#allocation1] ss:$9 sm:$0xff] %v1376
    %s1413 = scalar_lea.vmem [#allocation1], 1
    %1414 = vst [vmem:[%s1413] ss:$9 sm:$0xff] %v1378
    %s1415 = scalar_lea.vmem [#allocation1], 2
    %1416 = vst [vmem:[%s1415] ss:$9 sm:$0xff] %v1380
    %s1417 = scalar_lea.vmem [#allocation1], 3
    %1418 = vst [vmem:[%s1417] ss:$9 sm:$0xff] %v1383
    %s1419 = scalar_lea.vmem [#allocation1], 4
    %1420 = vst [vmem:[%s1419] ss:$9 sm:$0xff] %v1385
    %s1421 = scalar_lea.vmem [#allocation1], 5
    %1422 = vst [vmem:[%s1421] ss:$9 sm:$0xff] %v1387
    %s1423 = scalar_lea.vmem [#allocation1], 6
    %1424 = vst [vmem:[%s1423] ss:$9 sm:$0xff] %v1389
    %s1425 = scalar_lea.vmem [#allocation1], 7
    %1426 = vst [vmem:[%s1425] ss:$9 sm:$0xff] %v1390
    %v1427 = vld [vmem:[#allocation1] sm:$0xff]
    %1428 = vst [vmem:[#allocation1] ss:$9 sm:$0xff] %v1391
    %1429 = vst [vmem:[%s1413] ss:$9 sm:$0xff] %v1393
    %1430 = vst [vmem:[%s1415] ss:$9 sm:$0xff] %v1394
    %1431 = vst [vmem:[%s1417] ss:$9 sm:$0xff] %v1395
    %1432 = vst [vmem:[%s1419] ss:$9 sm:$0xff] %v1397
    %1433 = vst [vmem:[%s1421] ss:$9 sm:$0xff] %v1398
    %1434 = vst [vmem:[%s1423] ss:$9 sm:$0xff] %v1399
    %1435 = vst [vmem:[%s1425] ss:$9 sm:$0xff] %v1401
    %v1436 = vld [vmem:[#allocation1] sm:$0xff]
    %1437 = vst [vmem:[#allocation1] ss:$9 sm:$0xff] %v1402
    %1438 = vst [vmem:[%s1413] ss:$9 sm:$0xff] %v1403
    %1439 = vst [vmem:[%s1415] ss:$9 sm:$0xff] %v1405
    %1440 = vst [vmem:[%s1417] ss:$9 sm:$0xff] %v1406
    %1441 = vst [vmem:[%s1419] ss:$9 sm:$0xff] %v1407
    %1442 = vst [vmem:[%s1421] ss:$9 sm:$0xff] %v1409
    %1443 = vst [vmem:[%s1423] ss:$9 sm:$0xff] %v1410
    %1444 = vst [vmem:[%s1425] ss:$9 sm:$0xff] %v1411
    %v1445 = vld [vmem:[#allocation1] sm:$0xff]
    %v1465 = vunpack.c.l.b16 %v1358
    %v1466 = vunpack.c.l.b16 %v1359
    %v1467 = vunpack.c.l.b16 %v1360
    %v1468 = vunpack.c.l.b16 %v1361
    %v1469 = vunpack.c.l.b16 %v1362
    %v1470 = vunpack.c.l.b16 %v1363
    %v1471 = vunpack.c.l.b16 %v1364
    %v1472 = vunpack.c.l.b16 %v1365
    %v1473 = vunpack.c.l.b16 %v1366
    %v1474 = vunpack.c.l.b16 %v1367
    %v1475 = vunpack.c.l.b16 %v1368
    %v1476 = vunpack.c.l.b16 %v1369
    %v1477 = vunpack.c.l.b16 %v1370
    %v1478 = vunpack.c.l.b16 %v1371
    %v1479 = vunpack.c.l.b16 %v1372
    %v1480 = vunpack.c.l.b16 %v1373
    %v1481 = vpack.c.b16 %v1466, %v1465
    %v1482 = vpack.c.b16 %v1468, %v1467
    %v1483 = vpack.c.b16 %v1470, %v1469
    %v1484 = vpack.c.b16 %v1472, %v1471
    %v1485 = vpack.c.b16 %v1474, %v1473
    %v1486 = vpack.c.b16 %v1476, %v1475
    %v1487 = vpack.c.b16 %v1478, %v1477
    %v1488 = vpack.c.b16 %v1480, %v1479
    %1497 = vmatpush.bf16.msra.mxu0 %v1488
    %1498 = vmatpush.bf16.msra.mxu0 %v1487
    %1499 = vmatpush.bf16.msra.mxu0 %v1486
    %1500 = vmatpush.bf16.msra.mxu0 %v1485
    %1501 = vmatpush.bf16.msra.mxu0 %v1484
    %1502 = vmatpush.bf16.msra.mxu0 %v1483
    %1503 = vmatpush.bf16.msra.mxu0 %v1482
    %1504 = vmatpush.bf16.msra.mxu0 %v1481
    %1505 = vmatmul.bf16.gmra.mxu0 %v1427
    %v1506 = vpop.f32.mrf.mxu0
    %v1507 = vadd.f32 0.0, %v1506
    %v1508 = vpop.f32.mrf.mxu0
    %v1509 = vadd.f32 0.0, %v1508
    %1510 = vmatmul.bf16.gmra.mxu0 %v1436
    %v1511 = vpop.f32.mrf.mxu0
    %v1512 = vadd.f32 0.0, %v1511
    %v1513 = vpop.f32.mrf.mxu0
    %v1514 = vadd.f32 0.0, %v1513
    %1515 = vmatmul.bf16.gmra.mxu0 %v1445
    %v1516 = vpop.f32.mrf.mxu0
    %v1517 = vadd.f32 0.0, %v1516
    %v1518 = vpop.f32.mrf.mxu0
    %v1519 = vadd.f32 0.0, %v1518
    %1520 = vdwg.mxu0
    %v1527 = vrot.slane %v1507, 2
    %v1528 = vrot.slane %v1507, 4
    %v1529 = vrot.slane %v1507, 6
    %v1530 = vrot.slane %v1509, 2
    %v1531 = vrot.slane %v1509, 4
    %v1532 = vrot.slane %v1509, 6
    %v1533 = vrot.slane %v1512, 2
    %v1534 = vrot.slane %v1512, 4
    %v1535 = vrot.slane %v1512, 6
    %v1536 = vrot.slane %v1514, 2
    %v1537 = vrot.slane %v1514, 4
    %v1538 = vrot.slane %v1514, 6
    %v1539 = vrot.slane %v1517, 2
    %v1540 = vrot.slane %v1517, 4
    %v1541 = vrot.slane %v1517, 6
    %v1542 = vrot.slane %v1519, 2
    %v1543 = vrot.slane %v1519, 4
    %v1544 = vrot.slane %v1519, 6
    %v1563 = vadd.f32 %v1301, %v1507
    %v1564 = vadd.f32 %v1321, %v1527
    %v1565 = vadd.f32 %v1322, %v1528
    %v1566 = vadd.f32 %v1323, %v1529
    %v1567 = vadd.f32 %v1303, %v1509
    %v1568 = vadd.f32 %v1324, %v1530
    %v1569 = vadd.f32 %v1325, %v1531
    %v1570 = vadd.f32 %v1326, %v1532
    %v1571 = vadd.f32 %v1306, %v1512
    %v1572 = vadd.f32 %v1327, %v1533
    %v1573 = vadd.f32 %v1328, %v1534
    %v1574 = vadd.f32 %v1329, %v1535
    %v1575 = vadd.f32 %v1308, %v1514
    %v1576 = vadd.f32 %v1330, %v1536
    %v1577 = vadd.f32 %v1331, %v1537
    %v1578 = vadd.f32 %v1332, %v1538
    %v1579 = vadd.f32 %v1311, %v1517
    %v1580 = vadd.f32 %v1333, %v1539
    %v1581 = vadd.f32 %v1334, %v1540
    %v1582 = vadd.f32 %v1335, %v1541
    %v1583 = vadd.f32 %v1313, %v1519
    %v1584 = vadd.f32 %v1336, %v1542
    %v1585 = vadd.f32 %v1337, %v1543
    %v1586 = vadd.f32 %v1338, %v1544
    %1611 = vst [vmem:[#allocation1] ss:$4 sm:$0xff] %v1563
    %s1612 = scalar_lea.vmem [#allocation1], 1
    %1613 = vst [vmem:[%s1612] ss:$4 sm:$0xff] %v1564
    %s1614 = scalar_lea.vmem [#allocation1], 2
    %1615 = vst [vmem:[%s1614] ss:$4 sm:$0xff] %v1565
    %v1616 = vld.sshfl [vmem:[#allocation1] sm:$0xff pattern:$0x73625140]
    %s1617 = scalar_lea.vmem [#allocation1], 32
    %1618 = vst [vmem:[%s1617] ss:$4 sm:$0xff] %v1566
    %s1619 = scalar_lea.vmem [#allocation1], 33
    %1620 = vst [vmem:[%s1619] ss:$4 sm:$0xff] %v1567
    %s1621 = scalar_lea.vmem [#allocation1], 34
    %1622 = vst [vmem:[%s1621] ss:$4 sm:$0xff] %v1568
    %v1623 = vld.sshfl [vmem:[#allocation1 + $0x20] sm:$0xff pattern:$0x73625140]
    %1624 = vst [vmem:[#allocation1] ss:$4 sm:$0xff] %v1569
    %1625 = vst [vmem:[%s1612] ss:$4 sm:$0xff] %v1570
    %1626 = vst [vmem:[%s1614] ss:$4 sm:$0xff] %v1571
    %v1627 = vld.sshfl [vmem:[#allocation1] sm:$0xff pattern:$0x73625140]
    %1628 = vst [vmem:[%s1617] ss:$4 sm:$0xff] %v1572
    %1629 = vst [vmem:[%s1619] ss:$4 sm:$0xff] %v1573
    %1630 = vst [vmem:[%s1621] ss:$4 sm:$0xff] %v1574
    %v1631 = vld.sshfl [vmem:[#allocation1 + $0x20] sm:$0xff pattern:$0x73625140]
    %1632 = vst [vmem:[#allocation1] ss:$4 sm:$0xff] %v1575
    %1633 = vst [vmem:[%s1612] ss:$4 sm:$0xff] %v1576
    %1634 = vst [vmem:[%s1614] ss:$4 sm:$0xff] %v1577
    %v1635 = vld.sshfl [vmem:[#allocation1] sm:$0xff pattern:$0x73625140]
    %1636 = vst [vmem:[%s1617] ss:$4 sm:$0xff] %v1578
    %1637 = vst [vmem:[%s1619] ss:$4 sm:$0xff] %v1579
    %1638 = vst [vmem:[%s1621] ss:$4 sm:$0xff] %v1580
    %v1639 = vld.sshfl [vmem:[#allocation1 + $0x20] sm:$0xff pattern:$0x73625140]
    %1640 = vst [vmem:[#allocation1] ss:$4 sm:$0xff] %v1581
    %1641 = vst [vmem:[%s1612] ss:$4 sm:$0xff] %v1582
    %1642 = vst [vmem:[%s1614] ss:$4 sm:$0xff] %v1583
    %v1643 = vld.sshfl [vmem:[#allocation1] sm:$0xff pattern:$0x73625140]
    %1644 = vst [vmem:[%s1617] ss:$4 sm:$0xff] %v1584
    %1645 = vst [vmem:[%s1619] ss:$4 sm:$0xff] %v1585
    %1646 = vst [vmem:[%s1621] ss:$4 sm:$0xff] %v1586
    %v1647 = vld.sshfl [vmem:[#allocation1 + $0x20] sm:$0xff pattern:$0x73625140]
    %vm1656 = vcmask 1045504
    %v1657 = vsel %vm1656, %v1616, -inf
    %v1658 = vrot.slane %v1657, 4
    %v1659 = vmax.f32 %v1657, %v1658
    %v1660 = vrot.slane %v1659, 2
    %v1661 = vmax.f32 %v1659, %v1660
    %v1662 = vrot.slane %v1661, 1
    %v1663 = vmax.f32 %v1661, %v1662
    %v1664 = vsel %vm1656, %v1623, -inf
    %v1665 = vrot.slane %v1664, 4
    %v1666 = vmax.f32 %v1664, %v1665
    %v1667 = vrot.slane %v1666, 2
    %v1668 = vmax.f32 %v1666, %v1667
    %v1669 = vrot.slane %v1668, 1
    %v1670 = vmax.f32 %v1668, %v1669
    %v1671 = vsel %vm1656, %v1627, -inf
    %v1672 = vrot.slane %v1671, 4
    %v1673 = vmax.f32 %v1671, %v1672
    %v1674 = vrot.slane %v1673, 2
    %v1675 = vmax.f32 %v1673, %v1674
    %v1676 = vrot.slane %v1675, 1
    %v1677 = vmax.f32 %v1675, %v1676
    %v1678 = vsel %vm1656, %v1631, -inf
    %v1679 = vrot.slane %v1678, 4
    %v1680 = vmax.f32 %v1678, %v1679
    %v1681 = vrot.slane %v1680, 2
    %v1682 = vmax.f32 %v1680, %v1681
    %v1683 = vrot.slane %v1682, 1
    %v1684 = vmax.f32 %v1682, %v1683
    %v1685 = vsel %vm1656, %v1635, -inf
    %v1686 = vrot.slane %v1685, 4
    %v1687 = vmax.f32 %v1685, %v1686
    %v1688 = vrot.slane %v1687, 2
    %v1689 = vmax.f32 %v1687, %v1688
    %v1690 = vrot.slane %v1689, 1
    %v1691 = vmax.f32 %v1689, %v1690
    %v1692 = vsel %vm1656, %v1639, -inf
    %v1693 = vrot.slane %v1692, 4
    %v1694 = vmax.f32 %v1692, %v1693
    %v1695 = vrot.slane %v1694, 2
    %v1696 = vmax.f32 %v1694, %v1695
    %v1697 = vrot.slane %v1696, 1
    %v1698 = vmax.f32 %v1696, %v1697
    %v1699 = vsel %vm1656, %v1643, -inf
    %v1700 = vrot.slane %v1699, 4
    %v1701 = vmax.f32 %v1699, %v1700
    %v1702 = vrot.slane %v1701, 2
    %v1703 = vmax.f32 %v1701, %v1702
    %v1704 = vrot.slane %v1703, 1
    %v1705 = vmax.f32 %v1703, %v1704
    %v1706 = vsel %vm1656, %v1647, -inf
    %v1707 = vrot.slane %v1706, 4
    %v1708 = vmax.f32 %v1706, %v1707
    %v1709 = vrot.slane %v1708, 2
    %v1710 = vmax.f32 %v1708, %v1709
    %v1711 = vrot.slane %v1710, 1
    %v1712 = vmax.f32 %v1710, %v1711
    %v1713 = vperm.slane %v44, 1
    %v1714 = vadd.f32 %v1663, %v1713
    %v1715 = vadd.f32 %v1670, %v1713
    %v1716 = vadd.f32 %v1677, %v1713
    %v1717 = vadd.f32 %v1684, %v1713
    %v1718 = vadd.f32 %v1691, %v1713
    %v1719 = vadd.f32 %v1698, %v1713
    %v1720 = vadd.f32 %v1705, %v1713
    %v1721 = vadd.f32 %v1712, %v1713
    %v1722 = vmax.f32 %v1714, 0.0
    %v1723 = vmax.f32 %v1715, 0.0
    %v1724 = vmax.f32 %v1716, 0.0
    %v1725 = vmax.f32 %v1717, 0.0
    %v1726 = vmax.f32 %v1718, 0.0
    %v1727 = vmax.f32 %v1719, 0.0
    %v1728 = vmax.f32 %v1720, 0.0
    %v1729 = vmax.f32 %v1721, 0.0
    %v1730 = vpack.c.bf16 %v1722, %v1722
    %v1731 = vpack.c.bf16 %v1723, %v1723
    %v1732 = vpack.c.bf16 %v1724, %v1724
    %v1733 = vpack.c.bf16 %v1725, %v1725
    %v1734 = vpack.c.bf16 %v1726, %v1726
    %v1735 = vpack.c.bf16 %v1727, %v1727
    %v1736 = vpack.c.bf16 %v1728, %v1728
    %v1737 = vpack.c.bf16 %v1729, %v1729
    %s1738 = scalar_lea.vmem [#allocation2], 320
    %v1739 = vld [vmem:[%s1738] sm:$0xf]
    %v1740 = vld [vmem:[%s1738 + $0x4] sm:$0xf]
    %v1741 = vld [vmem:[%s1738 + $0x8] sm:$0xf]
    %v1742 = vld [vmem:[%s1738 + $0xc] sm:$0xf]
    %v1743 = vld [vmem:[%s1738 + $0x10] sm:$0xf]
    %v1744 = vld [vmem:[%s1738 + $0x14] sm:$0xf]
    %v1745 = vld [vmem:[%s1738 + $0x18] sm:$0xf]
    %v1746 = vld [vmem:[%s1738 + $0x1c] sm:$0xf]
    %v1747 = vld [vmem:[%s1738 + $0x20] sm:$0xf]
    %v1748 = vld [vmem:[%s1738 + $0x24] sm:$0xf]
    %v1749 = vld [vmem:[%s1738 + $0x28] sm:$0xf]
    %v1750 = vld [vmem:[%s1738 + $0x2c] sm:$0xf]
    %v1751 = vld [vmem:[%s1738 + $0x30] sm:$0xf]
    %v1752 = vld [vmem:[%s1738 + $0x34] sm:$0xf]
    %v1753 = vld [vmem:[%s1738 + $0x38] sm:$0xf]
    %v1754 = vld [vmem:[%s1738 + $0x3c] sm:$0xf]
    %s1755 = scalar_lea.vmem [#allocation2], 384
    %v1756 = vld [vmem:[%s1755] sm:$0xf]
    %v1757 = vld [vmem:[%s1755 + $0x4] sm:$0xf]
    %v1758 = vld [vmem:[%s1755 + $0x8] sm:$0xf]
    %v1759 = vld [vmem:[%s1755 + $0xc] sm:$0xf]
    %v1760 = vld [vmem:[%s1755 + $0x10] sm:$0xf]
    %v1761 = vld [vmem:[%s1755 + $0x14] sm:$0xf]
    %v1762 = vld [vmem:[%s1755 + $0x18] sm:$0xf]
    %v1763 = vld [vmem:[%s1755 + $0x1c] sm:$0xf]
    %v1764 = vld [vmem:[%s1755 + $0x20] sm:$0xf]
    %v1765 = vld [vmem:[%s1755 + $0x24] sm:$0xf]
    %v1766 = vld [vmem:[%s1755 + $0x28] sm:$0xf]
    %v1767 = vld [vmem:[%s1755 + $0x2c] sm:$0xf]
    %v1768 = vld [vmem:[%s1755 + $0x30] sm:$0xf]
    %v1769 = vld [vmem:[%s1755 + $0x34] sm:$0xf]
    %v1770 = vld [vmem:[%s1755 + $0x38] sm:$0xf]
    %v1771 = vld [vmem:[%s1755 + $0x3c] sm:$0xf]
    %v1772 = vpack.i.b16 %v209, %v206
    %v1773 = vpack.i.b16 %v223, %v220
    %v1774 = vpack.i.b16 %v237, %v234
    %v1775 = vpack.i.b16 %v251, %v248
    %1776 = vst [vmem:[#allocation1] ss:$9 sm:$0xff] %v258
    %s1777 = scalar_lea.vmem [#allocation1], 1
    %1778 = vst [vmem:[%s1777] ss:$9 sm:$0xff] %v259
    %s1780 = scalar_lea.vmem [#allocation1], 2
    %1781 = vst [vmem:[%s1780] ss:$9 sm:$0xff] %v1772
    %s1782 = scalar_lea.vmem [#allocation1], 3
    %1783 = vst [vmem:[%s1782] ss:$9 sm:$0xff] %v262
    %s1784 = scalar_lea.vmem [#allocation1], 4
    %1785 = vst [vmem:[%s1784] ss:$9 sm:$0xff] %v263
    %s1786 = scalar_lea.vmem [#allocation1], 5
    %1787 = vst [vmem:[%s1786] ss:$9 sm:$0xff] %v265
    %s1788 = scalar_lea.vmem [#allocation1], 6
    %1789 = vst [vmem:[%s1788] ss:$9 sm:$0xff] %v266
    %s1791 = scalar_lea.vmem [#allocation1], 7
    %1792 = vst [vmem:[%s1791] ss:$9 sm:$0xff] %v1773
    %v1793 = vld [vmem:[#allocation1] sm:$0xff]
    %1794 = vst [vmem:[#allocation1] ss:$9 sm:$0xff] %v269
    %1795 = vst [vmem:[%s1777] ss:$9 sm:$0xff] %v270
    %1796 = vst [vmem:[%s1780] ss:$9 sm:$0xff] %v272
    %1797 = vst [vmem:[%s1782] ss:$9 sm:$0xff] %v273
    %1799 = vst [vmem:[%s1784] ss:$9 sm:$0xff] %v1774
    %1800 = vst [vmem:[%s1786] ss:$9 sm:$0xff] %v276
    %1801 = vst [vmem:[%s1788] ss:$9 sm:$0xff] %v277
    %1802 = vst [vmem:[%s1791] ss:$9 sm:$0xff] %v279
    %v1803 = vld [vmem:[#allocation1] sm:$0xff]
    %1804 = vst [vmem:[#allocation1] ss:$9 sm:$0xff] %v280
    %1806 = vst [vmem:[%s1777] ss:$9 sm:$0xff] %v1775
    %1807 = vst [vmem:[%s1780] ss:$9 sm:$0xff] %v283
    %1808 = vst [vmem:[%s1782] ss:$9 sm:$0xff] %v284
    %v1809 = vld [vmem:[#allocation1] sm:$0xff]
    %v1829 = vunpack.c.l.b16 %v1756
    %v1830 = vunpack.c.l.b16 %v1757
    %v1831 = vunpack.c.l.b16 %v1758
    %v1832 = vunpack.c.l.b16 %v1759
    %v1833 = vunpack.c.l.b16 %v1760
    %v1834 = vunpack.c.l.b16 %v1761
    %v1835 = vunpack.c.l.b16 %v1762
    %v1836 = vunpack.c.l.b16 %v1763
    %v1837 = vunpack.c.l.b16 %v1764
    %v1838 = vunpack.c.l.b16 %v1765
    %v1839 = vunpack.c.l.b16 %v1766
    %v1840 = vunpack.c.l.b16 %v1767
    %v1841 = vunpack.c.l.b16 %v1768
    %v1842 = vunpack.c.l.b16 %v1769
    %v1843 = vunpack.c.l.b16 %v1770
    %v1844 = vunpack.c.l.b16 %v1771
    %v1845 = vpack.c.b16 %v1830, %v1829
    %v1846 = vpack.c.b16 %v1832, %v1831
    %v1847 = vpack.c.b16 %v1834, %v1833
    %v1848 = vpack.c.b16 %v1836, %v1835
    %v1849 = vpack.c.b16 %v1838, %v1837
    %v1850 = vpack.c.b16 %v1840, %v1839
    %v1851 = vpack.c.b16 %v1842, %v1841
    %v1852 = vpack.c.b16 %v1844, %v1843
    %1861 = vmatpush.bf16.msra.mxu0 %v1852
    %1862 = vmatpush.bf16.msra.mxu0 %v1851
    %1863 = vmatpush.bf16.msra.mxu0 %v1850
    %1864 = vmatpush.bf16.msra.mxu0 %v1849
    %1865 = vmatpush.bf16.msra.mxu0 %v1848
    %1866 = vmatpush.bf16.msra.mxu0 %v1847
    %1867 = vmatpush.bf16.msra.mxu0 %v1846
    %1868 = vmatpush.bf16.msra.mxu0 %v1845
    %1869 = vmatmul.bf16.gmra.mxu0 %v1793
    %v1870 = vpop.f32.mrf.mxu0
    %v1871 = vadd.f32 0.0, %v1870
    %v1872 = vpop.f32.mrf.mxu0
    %v1873 = vadd.f32 0.0, %v1872
    %1874 = vmatmul.bf16.gmra.mxu0 %v1803
    %v1875 = vpop.f32.mrf.mxu0
    %v1876 = vadd.f32 0.0, %v1875
    %v1877 = vpop.f32.mrf.mxu0
    %v1878 = vadd.f32 0.0, %v1877
    %1879 = vmatmul.bf16.gmra.mxu0 %v1809
    %v1880 = vpop.f32.mrf.mxu0
    %v1881 = vadd.f32 0.0, %v1880
    %v1882 = vpop.f32.mrf.mxu0
    %1883 = vdwg.mxu0
    %v1884 = vpack.i.b16 %v434, %v205
    %v1885 = vpack.i.b16 %v436, %v219
    %v1886 = vpack.i.b16 %v438, %v233
    %v1887 = vpack.i.b16 %v440, %v247
    %1888 = vst [vmem:[#allocation1] ss:$9 sm:$0xff] %v441
    %s1889 = scalar_lea.vmem [#allocation1], 1
    %1890 = vst [vmem:[%s1889] ss:$9 sm:$0xff] %v442
    %s1892 = scalar_lea.vmem [#allocation1], 2
    %1893 = vst [vmem:[%s1892] ss:$9 sm:$0xff] %v1884
    %s1894 = scalar_lea.vmem [#allocation1], 3
    %1895 = vst [vmem:[%s1894] ss:$9 sm:$0xff] %v445
    %s1896 = scalar_lea.vmem [#allocation1], 4
    %1897 = vst [vmem:[%s1896] ss:$9 sm:$0xff] %v446
    %s1898 = scalar_lea.vmem [#allocation1], 5
    %1899 = vst [vmem:[%s1898] ss:$9 sm:$0xff] %v448
    %s1900 = scalar_lea.vmem [#allocation1], 6
    %1901 = vst [vmem:[%s1900] ss:$9 sm:$0xff] %v449
    %s1903 = scalar_lea.vmem [#allocation1], 7
    %1904 = vst [vmem:[%s1903] ss:$9 sm:$0xff] %v1885
    %v1905 = vld [vmem:[#allocation1] sm:$0xff]
    %1906 = vst [vmem:[#allocation1] ss:$9 sm:$0xff] %v452
    %1907 = vst [vmem:[%s1889] ss:$9 sm:$0xff] %v453
    %1908 = vst [vmem:[%s1892] ss:$9 sm:$0xff] %v455
    %1909 = vst [vmem:[%s1894] ss:$9 sm:$0xff] %v456
    %1911 = vst [vmem:[%s1896] ss:$9 sm:$0xff] %v1886
    %1912 = vst [vmem:[%s1898] ss:$9 sm:$0xff] %v459
    %1913 = vst [vmem:[%s1900] ss:$9 sm:$0xff] %v460
    %1914 = vst [vmem:[%s1903] ss:$9 sm:$0xff] %v462
    %v1915 = vld [vmem:[#allocation1] sm:$0xff]
    %1916 = vst [vmem:[#allocation1] ss:$9 sm:$0xff] %v463
    %1918 = vst [vmem:[%s1889] ss:$9 sm:$0xff] %v1887
    %1919 = vst [vmem:[%s1892] ss:$9 sm:$0xff] %v466
    %1920 = vst [vmem:[%s1894] ss:$9 sm:$0xff] %v467
    %v1921 = vld [vmem:[#allocation1] sm:$0xff]
    %v1941 = vunpack.c.l.b16 %v1739
    %v1942 = vunpack.c.l.b16 %v1740
    %v1943 = vunpack.c.l.b16 %v1741
    %v1944 = vunpack.c.l.b16 %v1742
    %v1945 = vunpack.c.l.b16 %v1743
    %v1946 = vunpack.c.l.b16 %v1744
    %v1947 = vunpack.c.l.b16 %v1745
    %v1948 = vunpack.c.l.b16 %v1746
    %v1949 = vunpack.c.l.b16 %v1747
    %v1950 = vunpack.c.l.b16 %v1748
    %v1951 = vunpack.c.l.b16 %v1749
    %v1952 = vunpack.c.l.b16 %v1750
    %v1953 = vunpack.c.l.b16 %v1751
    %v1954 = vunpack.c.l.b16 %v1752
    %v1955 = vunpack.c.l.b16 %v1753
    %v1956 = vunpack.c.l.b16 %v1754
    %v1957 = vpack.c.b16 %v1942, %v1941
    %v1958 = vpack.c.b16 %v1944, %v1943
    %v1959 = vpack.c.b16 %v1946, %v1945
    %v1960 = vpack.c.b16 %v1948, %v1947
    %v1961 = vpack.c.b16 %v1950, %v1949
    %v1962 = vpack.c.b16 %v1952, %v1951
    %v1963 = vpack.c.b16 %v1954, %v1953
    %v1964 = vpack.c.b16 %v1956, %v1955
    %1973 = vmatpush.bf16.msra.mxu0 %v1964
    %1974 = vmatpush.bf16.msra.mxu0 %v1963
    %1975 = vmatpush.bf16.msra.mxu0 %v1962
    %1976 = vmatpush.bf16.msra.mxu0 %v1961
    %1977 = vmatpush.bf16.msra.mxu0 %v1960
    %1978 = vmatpush.bf16.msra.mxu0 %v1959
    %1979 = vmatpush.bf16.msra.mxu0 %v1958
    %1980 = vmatpush.bf16.msra.mxu0 %v1957
    %1981 = vmatmul.bf16.gmra.mxu0 %v1905
    %v1982 = vpop.f32.mrf.mxu0
    %v1983 = vadd.f32 %v1871, %v1982
    %v1984 = vpop.f32.mrf.mxu0
    %v1985 = vadd.f32 %v1873, %v1984
    %1986 = vmatmul.bf16.gmra.mxu0 %v1915
    %v1987 = vpop.f32.mrf.mxu0
    %v1988 = vadd.f32 %v1876, %v1987
    %v1989 = vpop.f32.mrf.mxu0
    %v1990 = vadd.f32 %v1878, %v1989
    %1991 = vmatmul.bf16.gmra.mxu0 %v1921
    %v1992 = vpop.f32.mrf.mxu0
    %v1993 = vadd.f32 %v1881, %v1992
    %v1994 = vpop.f32.mrf.mxu0
    %1995 = vdwg.mxu0
    %v2001 = vrot.slane %v1983, 1
    %v2002 = vrot.slane %v1983, 2
    %v2003 = vrot.slane %v1983, 3
    %v2004 = vrot.slane %v1983, 4
    %v2005 = vrot.slane %v1983, 5
    %v2006 = vrot.slane %v1983, 6
    %v2007 = vrot.slane %v1983, 7
    %v2008 = vrot.slane %v1985, 1
    %v2009 = vrot.slane %v1985, 2
    %v2010 = vrot.slane %v1985, 3
    %v2011 = vrot.slane %v1985, 4
    %v2012 = vrot.slane %v1985, 5
    %v2013 = vrot.slane %v1985, 6
    %v2014 = vrot.slane %v1985, 7
    %v2015 = vrot.slane %v1988, 1
    %v2016 = vrot.slane %v1988, 2
    %v2017 = vrot.slane %v1988, 3
    %v2018 = vrot.slane %v1988, 4
    %v2019 = vrot.slane %v1988, 5
    %v2020 = vrot.slane %v1988, 6
    %v2021 = vrot.slane %v1988, 7
    %v2022 = vrot.slane %v1990, 1
    %v2023 = vrot.slane %v1990, 2
    %v2024 = vrot.slane %v1990, 3
    %v2025 = vrot.slane %v1990, 4
    %v2026 = vrot.slane %v1990, 5
    %v2027 = vrot.slane %v1990, 6
    %v2028 = vrot.slane %v1990, 7
    %v2029 = vrot.slane %v1993, 1
    %v2030 = vrot.slane %v1993, 2
    %v2031 = vrot.slane %v1993, 3
    %v2032 = vrot.slane %v1993, 4
    %v2033 = vrot.slane %v1993, 5
    %v2034 = vrot.slane %v1993, 6
    %v2035 = vrot.slane %v1993, 7
    %s2071 = scalar_lea.vmem [#allocation2], 448
    %v2072 = vld [vmem:[%s2071] sm:$0xf]
    %v2073 = vld [vmem:[%s2071 + $0x4] sm:$0xf]
    %v2074 = vld [vmem:[%s2071 + $0x8] sm:$0xf]
    %v2075 = vld [vmem:[%s2071 + $0xc] sm:$0xf]
    %v2076 = vld [vmem:[%s2071 + $0x10] sm:$0xf]
    %v2077 = vld [vmem:[%s2071 + $0x14] sm:$0xf]
    %v2078 = vld [vmem:[%s2071 + $0x18] sm:$0xf]
    %v2079 = vld [vmem:[%s2071 + $0x1c] sm:$0xf]
    %v2080 = vld [vmem:[%s2071 + $0x20] sm:$0xf]
    %v2081 = vld [vmem:[%s2071 + $0x24] sm:$0xf]
    %v2082 = vld [vmem:[%s2071 + $0x28] sm:$0xf]
    %v2083 = vld [vmem:[%s2071 + $0x2c] sm:$0xf]
    %v2084 = vld [vmem:[%s2071 + $0x30] sm:$0xf]
    %v2085 = vld [vmem:[%s2071 + $0x34] sm:$0xf]
    %v2086 = vld [vmem:[%s2071 + $0x38] sm:$0xf]
    %v2087 = vld [vmem:[%s2071 + $0x3c] sm:$0xf]
    %2088 = vst [vmem:[#allocation1] sm:$0xff] %v36
    %s2089 = scalar_lea.vmem [#allocation1], 1
    %v2090 = vld [vmem:[%s2089] ss:$4 sm:$0xff]
    %s2092 = scalar_lea.vmem [#allocation1], 2
    %v2093 = vld [vmem:[%s2092] ss:$4 sm:$0xff]
    %s2095 = scalar_lea.vmem [#allocation1], 3
    %v2096 = vld [vmem:[%s2095] ss:$4 sm:$0xff]
    %2098 = vst [vmem:[#allocation1 + $0x20] sm:$0xff] %v37
    %s2099 = scalar_lea.vmem [#allocation1], 33
    %v2100 = vld [vmem:[%s2099] ss:$4 sm:$0xff]
    %s2102 = scalar_lea.vmem [#allocation1], 34
    %v2103 = vld [vmem:[%s2102] ss:$4 sm:$0xff]
    %s2105 = scalar_lea.vmem [#allocation1], 35
    %v2106 = vld [vmem:[%s2105] ss:$4 sm:$0xff]
    %2108 = vst [vmem:[#allocation1] sm:$0xff] %v38
    %v2109 = vld [vmem:[%s2089] ss:$4 sm:$0xff]
    %v2111 = vld [vmem:[%s2092] ss:$4 sm:$0xff]
    %v2113 = vld [vmem:[%s2095] ss:$4 sm:$0xff]
    %2115 = vst [vmem:[#allocation1 + $0x20] sm:$0xff] %v39
    %v2116 = vld [vmem:[%s2099] ss:$4 sm:$0xff]
    %v2118 = vld [vmem:[%s2102] ss:$4 sm:$0xff]
    %v2120 = vld [vmem:[%s2105] ss:$4 sm:$0xff]
    %2122 = vst [vmem:[#allocation1] sm:$0xff] %v40
    %v2123 = vld [vmem:[%s2089] ss:$4 sm:$0xff]
    %v2125 = vld [vmem:[%s2092] ss:$4 sm:$0xff]
    %v2127 = vld [vmem:[%s2095] ss:$4 sm:$0xff]
    %2129 = vst [vmem:[#allocation1 + $0x20] sm:$0xff] %v41
    %v2130 = vld [vmem:[%s2099] ss:$4 sm:$0xff]
    %v2132 = vld [vmem:[%s2102] ss:$4 sm:$0xff]
    %v2134 = vld [vmem:[%s2105] ss:$4 sm:$0xff]
    %2136 = vst [vmem:[#allocation1] sm:$0xff] %v42
    %v2137 = vld [vmem:[%s2089] ss:$4 sm:$0xff]
    %v2139 = vld [vmem:[%s2092] ss:$4 sm:$0xff]
    %v2141 = vld [vmem:[%s2095] ss:$4 sm:$0xff]
    %2143 = vst [vmem:[#allocation1 + $0x20] sm:$0xff] %v43
    %v2144 = vld [vmem:[%s2099] ss:$4 sm:$0xff]
    %v2146 = vld [vmem:[%s2102] ss:$4 sm:$0xff]
    %v2148 = vld [vmem:[%s2105] ss:$4 sm:$0xff]
    %v2150 = vunpack.i.l.s16 %v2090
    %v2151 = vunpack.i.h.s16 %v2090
    %v2152 = vunpack.i.l.s16 %v2093
    %v2153 = vunpack.i.h.s16 %v2093
    %v2154 = vunpack.i.l.s16 %v2096
    %v2155 = vunpack.i.l.s16 %v2100
    %v2156 = vunpack.i.h.s16 %v2100
    %v2157 = vunpack.i.l.s16 %v2103
    %v2158 = vunpack.i.h.s16 %v2103
    %v2159 = vunpack.i.l.s16 %v2106
    %v2160 = vunpack.i.l.s16 %v2109
    %v2161 = vunpack.i.h.s16 %v2109
    %v2162 = vunpack.i.l.s16 %v2111
    %v2163 = vunpack.i.h.s16 %v2111
    %v2164 = vunpack.i.l.s16 %v2113
    %v2165 = vunpack.i.l.s16 %v2116
    %v2166 = vunpack.i.h.s16 %v2116
    %v2167 = vunpack.i.l.s16 %v2118
    %v2168 = vunpack.i.h.s16 %v2118
    %v2169 = vunpack.i.l.s16 %v2120
    %v2170 = vunpack.i.l.s16 %v2123
    %v2171 = vunpack.i.h.s16 %v2123
    %v2172 = vunpack.i.l.s16 %v2125
    %v2173 = vunpack.i.h.s16 %v2125
    %v2174 = vunpack.i.l.s16 %v2127
    %v2175 = vunpack.i.l.s16 %v2130
    %v2176 = vunpack.i.h.s16 %v2130
    %v2177 = vunpack.i.l.s16 %v2132
    %v2178 = vunpack.i.h.s16 %v2132
    %v2179 = vunpack.i.l.s16 %v2134
    %v2180 = vunpack.i.l.s16 %v2137
    %v2181 = vunpack.i.h.s16 %v2137
    %v2182 = vunpack.i.l.s16 %v2139
    %v2183 = vunpack.i.h.s16 %v2139
    %v2184 = vunpack.i.l.s16 %v2141
    %v2185 = vunpack.i.l.s16 %v2144
    %v2186 = vunpack.i.h.s16 %v2144
    %v2187 = vunpack.i.l.s16 %v2146
    %v2188 = vunpack.i.h.s16 %v2146
    %v2189 = vunpack.i.l.s16 %v2148
    %v2190 = vpack.i.b16 %v2151, %v2150
    %v2191 = vpack.i.b16 %v2153, %v2152
    %v2192 = vpack.i.b16 %v2155, %v2154
    %v2193 = vpack.i.b16 %v2157, %v2156
    %v2194 = vpack.i.b16 %v2159, %v2158
    %v2195 = vpack.i.b16 %v2161, %v2160
    %v2196 = vpack.i.b16 %v2163, %v2162
    %v2197 = vpack.i.b16 %v2165, %v2164
    %v2198 = vpack.i.b16 %v2167, %v2166
    %v2199 = vpack.i.b16 %v2169, %v2168
    %v2200 = vpack.i.b16 %v2171, %v2170
    %v2201 = vpack.i.b16 %v2173, %v2172
    %v2202 = vpack.i.b16 %v2175, %v2174
    %v2203 = vpack.i.b16 %v2177, %v2176
    %v2204 = vpack.i.b16 %v2179, %v2178
    %v2205 = vpack.i.b16 %v2181, %v2180
    %v2206 = vpack.i.b16 %v2183, %v2182
    %v2207 = vpack.i.b16 %v2185, %v2184
    %v2208 = vpack.i.b16 %v2187, %v2186
    %v2209 = vpack.i.b16 %v2189, %v2188
    %2211 = vst [vmem:[#allocation1] ss:$9 sm:$0xff] %v2190
    %s2213 = scalar_lea.vmem [#allocation1], 1
    %2214 = vst [vmem:[%s2213] ss:$9 sm:$0xff] %v2191
    %s2216 = scalar_lea.vmem [#allocation1], 2
    %2217 = vst [vmem:[%s2216] ss:$9 sm:$0xff] %v2192
    %s2219 = scalar_lea.vmem [#allocation1], 3
    %2220 = vst [vmem:[%s2219] ss:$9 sm:$0xff] %v2193
    %s2222 = scalar_lea.vmem [#allocation1], 4
    %2223 = vst [vmem:[%s2222] ss:$9 sm:$0xff] %v2194
    %s2225 = scalar_lea.vmem [#allocation1], 5
    %2226 = vst [vmem:[%s2225] ss:$9 sm:$0xff] %v2195
    %s2228 = scalar_lea.vmem [#allocation1], 6
    %2229 = vst [vmem:[%s2228] ss:$9 sm:$0xff] %v2196
    %s2231 = scalar_lea.vmem [#allocation1], 7
    %2232 = vst [vmem:[%s2231] ss:$9 sm:$0xff] %v2197
    %v2233 = vld [vmem:[#allocation1] sm:$0xff]
    %2235 = vst [vmem:[#allocation1] ss:$9 sm:$0xff] %v2198
    %2237 = vst [vmem:[%s2213] ss:$9 sm:$0xff] %v2199
    %2239 = vst [vmem:[%s2216] ss:$9 sm:$0xff] %v2200
    %2241 = vst [vmem:[%s2219] ss:$9 sm:$0xff] %v2201
    %2243 = vst [vmem:[%s2222] ss:$9 sm:$0xff] %v2202
    %2245 = vst [vmem:[%s2225] ss:$9 sm:$0xff] %v2203
    %2247 = vst [vmem:[%s2228] ss:$9 sm:$0xff] %v2204
    %2249 = vst [vmem:[%s2231] ss:$9 sm:$0xff] %v2205
    %v2250 = vld [vmem:[#allocation1] sm:$0xff]
    %2252 = vst [vmem:[#allocation1] ss:$9 sm:$0xff] %v2206
    %2254 = vst [vmem:[%s2213] ss:$9 sm:$0xff] %v2207
    %2256 = vst [vmem:[%s2216] ss:$9 sm:$0xff] %v2208
    %2258 = vst [vmem:[%s2219] ss:$9 sm:$0xff] %v2209
    %v2259 = vld [vmem:[#allocation1] sm:$0xff]
    %v2279 = vunpack.c.l.b16 %v2072
    %v2280 = vunpack.c.l.b16 %v2073
    %v2281 = vunpack.c.l.b16 %v2074
    %v2282 = vunpack.c.l.b16 %v2075
    %v2283 = vunpack.c.l.b16 %v2076
    %v2284 = vunpack.c.l.b16 %v2077
    %v2285 = vunpack.c.l.b16 %v2078
    %v2286 = vunpack.c.l.b16 %v2079
    %v2287 = vunpack.c.l.b16 %v2080
    %v2288 = vunpack.c.l.b16 %v2081
    %v2289 = vunpack.c.l.b16 %v2082
    %v2290 = vunpack.c.l.b16 %v2083
    %v2291 = vunpack.c.l.b16 %v2084
    %v2292 = vunpack.c.l.b16 %v2085
    %v2293 = vunpack.c.l.b16 %v2086
    %v2294 = vunpack.c.l.b16 %v2087
    %v2295 = vpack.c.b16 %v2280, %v2279
    %v2296 = vpack.c.b16 %v2282, %v2281
    %v2297 = vpack.c.b16 %v2284, %v2283
    %v2298 = vpack.c.b16 %v2286, %v2285
    %v2299 = vpack.c.b16 %v2288, %v2287
    %v2300 = vpack.c.b16 %v2290, %v2289
    %v2301 = vpack.c.b16 %v2292, %v2291
    %v2302 = vpack.c.b16 %v2294, %v2293
    %2311 = vmatpush.bf16.msra.mxu0 %v2302
    %2312 = vmatpush.bf16.msra.mxu0 %v2301
    %2313 = vmatpush.bf16.msra.mxu0 %v2300
    %2314 = vmatpush.bf16.msra.mxu0 %v2299
    %2315 = vmatpush.bf16.msra.mxu0 %v2298
    %2316 = vmatpush.bf16.msra.mxu0 %v2297
    %2317 = vmatpush.bf16.msra.mxu0 %v2296
    %2318 = vmatpush.bf16.msra.mxu0 %v2295
    %2319 = vmatmul.bf16.gmra.mxu0 %v2233
    %v2320 = vpop.f32.mrf.mxu0
    %v2321 = vadd.f32 0.0, %v2320
    %v2322 = vpop.f32.mrf.mxu0
    %v2323 = vadd.f32 0.0, %v2322
    %2324 = vmatmul.bf16.gmra.mxu0 %v2250
    %v2325 = vpop.f32.mrf.mxu0
    %v2326 = vadd.f32 0.0, %v2325
    %v2327 = vpop.f32.mrf.mxu0
    %v2328 = vadd.f32 0.0, %v2327
    %2329 = vmatmul.bf16.gmra.mxu0 %v2259
    %v2330 = vpop.f32.mrf.mxu0
    %v2331 = vadd.f32 0.0, %v2330
    %v2332 = vpop.f32.mrf.mxu0
    %2333 = vdwg.mxu0
    %v2339 = vrot.slane %v2321, 1
    %v2340 = vrot.slane %v2321, 2
    %v2341 = vrot.slane %v2321, 3
    %v2342 = vrot.slane %v2321, 4
    %v2343 = vrot.slane %v2321, 5
    %v2344 = vrot.slane %v2321, 6
    %v2345 = vrot.slane %v2321, 7
    %v2346 = vrot.slane %v2323, 1
    %v2347 = vrot.slane %v2323, 2
    %v2348 = vrot.slane %v2323, 3
    %v2349 = vrot.slane %v2323, 4
    %v2350 = vrot.slane %v2323, 5
    %v2351 = vrot.slane %v2323, 6
    %v2352 = vrot.slane %v2323, 7
    %v2353 = vrot.slane %v2326, 1
    %v2354 = vrot.slane %v2326, 2
    %v2355 = vrot.slane %v2326, 3
    %v2356 = vrot.slane %v2326, 4
    %v2357 = vrot.slane %v2326, 5
    %v2358 = vrot.slane %v2326, 6
    %v2359 = vrot.slane %v2326, 7
    %v2360 = vrot.slane %v2328, 1
    %v2361 = vrot.slane %v2328, 2
    %v2362 = vrot.slane %v2328, 3
    %v2363 = vrot.slane %v2328, 4
    %v2364 = vrot.slane %v2328, 5
    %v2365 = vrot.slane %v2328, 6
    %v2366 = vrot.slane %v2328, 7
    %v2367 = vrot.slane %v2331, 1
    %v2368 = vrot.slane %v2331, 2
    %v2369 = vrot.slane %v2331, 3
    %v2370 = vrot.slane %v2331, 4
    %v2371 = vrot.slane %v2331, 5
    %v2372 = vrot.slane %v2331, 6
    %v2373 = vrot.slane %v2331, 7
    %v2409 = vadd.f32 %v1983, %v2321
    %v2410 = vadd.f32 %v2001, %v2339
    %v2411 = vadd.f32 %v2002, %v2340
    %v2412 = vadd.f32 %v2003, %v2341
    %v2413 = vadd.f32 %v2004, %v2342
    %v2414 = vadd.f32 %v2005, %v2343
    %v2415 = vadd.f32 %v2006, %v2344
    %v2416 = vadd.f32 %v2007, %v2345
    %v2417 = vadd.f32 %v1985, %v2323
    %v2418 = vadd.f32 %v2008, %v2346
    %v2419 = vadd.f32 %v2009, %v2347
    %v2420 = vadd.f32 %v2010, %v2348
    %v2421 = vadd.f32 %v2011, %v2349
    %v2422 = vadd.f32 %v2012, %v2350
    %v2423 = vadd.f32 %v2013, %v2351
    %v2424 = vadd.f32 %v2014, %v2352
    %v2425 = vadd.f32 %v1988, %v2326
    %v2426 = vadd.f32 %v2015, %v2353
    %v2427 = vadd.f32 %v2016, %v2354
    %v2428 = vadd.f32 %v2017, %v2355
    %v2429 = vadd.f32 %v2018, %v2356
    %v2430 = vadd.f32 %v2019, %v2357
    %v2431 = vadd.f32 %v2020, %v2358
    %v2432 = vadd.f32 %v2021, %v2359
    %v2433 = vadd.f32 %v1990, %v2328
    %v2434 = vadd.f32 %v2022, %v2360
    %v2435 = vadd.f32 %v2023, %v2361
    %v2436 = vadd.f32 %v2024, %v2362
    %v2437 = vadd.f32 %v2025, %v2363
    %v2438 = vadd.f32 %v2026, %v2364
    %v2439 = vadd.f32 %v2027, %v2365
    %v2440 = vadd.f32 %v2028, %v2366
    %v2441 = vadd.f32 %v1993, %v2331
    %v2442 = vadd.f32 %v2029, %v2367
    %v2443 = vadd.f32 %v2030, %v2368
    %v2444 = vadd.f32 %v2031, %v2369
    %v2445 = vadd.f32 %v2032, %v2370
    %v2446 = vadd.f32 %v2033, %v2371
    %v2447 = vadd.f32 %v2034, %v2372
    %v2448 = vadd.f32 %v2035, %v2373
    %s2449 = scalar_lea.vmem [#allocation2], 512
    %v2450 = vld [vmem:[%s2449] sm:$0xf]
    %v2451 = vld [vmem:[%s2449 + $0x4] sm:$0xf]
    %v2452 = vld [vmem:[%s2449 + $0x8] sm:$0xf]
    %v2453 = vld [vmem:[%s2449 + $0xc] sm:$0xf]
    %v2454 = vld [vmem:[%s2449 + $0x10] sm:$0xf]
    %v2455 = vld [vmem:[%s2449 + $0x14] sm:$0xf]
    %v2456 = vld [vmem:[%s2449 + $0x18] sm:$0xf]
    %v2457 = vld [vmem:[%s2449 + $0x1c] sm:$0xf]
    %v2458 = vld [vmem:[%s2449 + $0x20] sm:$0xf]
    %v2459 = vld [vmem:[%s2449 + $0x24] sm:$0xf]
    %v2460 = vld [vmem:[%s2449 + $0x28] sm:$0xf]
    %v2461 = vld [vmem:[%s2449 + $0x2c] sm:$0xf]
    %v2462 = vld [vmem:[%s2449 + $0x30] sm:$0xf]
    %v2463 = vld [vmem:[%s2449 + $0x34] sm:$0xf]
    %v2464 = vld [vmem:[%s2449 + $0x38] sm:$0xf]
    %v2465 = vld [vmem:[%s2449 + $0x3c] sm:$0xf]
    %2466 = vst [vmem:[#allocation1] sm:$0xff] %v36
    %s2467 = scalar_lea.vmem [#allocation1], 1
    %v2468 = vld [vmem:[%s2467] ss:$4 sm:$0xff]
    %s2470 = scalar_lea.vmem [#allocation1], 2
    %v2471 = vld [vmem:[%s2470] ss:$4 sm:$0xff]
    %s2473 = scalar_lea.vmem [#allocation1], 3
    %v2474 = vld [vmem:[%s2473] ss:$4 sm:$0xff]
    %2476 = vst [vmem:[#allocation1 + $0x20] sm:$0xff] %v37
    %s2477 = scalar_lea.vmem [#allocation1], 33
    %v2478 = vld [vmem:[%s2477] ss:$4 sm:$0xff]
    %s2480 = scalar_lea.vmem [#allocation1], 34
    %v2481 = vld [vmem:[%s2480] ss:$4 sm:$0xff]
    %s2483 = scalar_lea.vmem [#allocation1], 35
    %v2484 = vld [vmem:[%s2483] ss:$4 sm:$0xff]
    %2486 = vst [vmem:[#allocation1] sm:$0xff] %v38
    %v2487 = vld [vmem:[%s2467] ss:$4 sm:$0xff]
    %v2489 = vld [vmem:[%s2470] ss:$4 sm:$0xff]
    %v2491 = vld [vmem:[%s2473] ss:$4 sm:$0xff]
    %2493 = vst [vmem:[#allocation1 + $0x20] sm:$0xff] %v39
    %v2494 = vld [vmem:[%s2477] ss:$4 sm:$0xff]
    %v2496 = vld [vmem:[%s2480] ss:$4 sm:$0xff]
    %v2498 = vld [vmem:[%s2483] ss:$4 sm:$0xff]
    %2500 = vst [vmem:[#allocation1] sm:$0xff] %v40
    %v2501 = vld [vmem:[%s2467] ss:$4 sm:$0xff]
    %v2503 = vld [vmem:[%s2470] ss:$4 sm:$0xff]
    %v2505 = vld [vmem:[%s2473] ss:$4 sm:$0xff]
    %2507 = vst [vmem:[#allocation1 + $0x20] sm:$0xff] %v41
    %v2508 = vld [vmem:[%s2477] ss:$4 sm:$0xff]
    %v2510 = vld [vmem:[%s2480] ss:$4 sm:$0xff]
    %v2512 = vld [vmem:[%s2483] ss:$4 sm:$0xff]
    %2514 = vst [vmem:[#allocation1] sm:$0xff] %v42
    %v2515 = vld [vmem:[%s2467] ss:$4 sm:$0xff]
    %v2517 = vld [vmem:[%s2470] ss:$4 sm:$0xff]
    %v2519 = vld [vmem:[%s2473] ss:$4 sm:$0xff]
    %2521 = vst [vmem:[#allocation1 + $0x20] sm:$0xff] %v43
    %v2522 = vld [vmem:[%s2477] ss:$4 sm:$0xff]
    %v2524 = vld [vmem:[%s2480] ss:$4 sm:$0xff]
    %v2526 = vld [vmem:[%s2483] ss:$4 sm:$0xff]
    %v2528 = vunpack.i.h.s16 %v2468
    %v2529 = vunpack.i.l.s16 %v2471
    %v2530 = vunpack.i.h.s16 %v2471
    %v2531 = vunpack.i.l.s16 %v2474
    %v2532 = vunpack.i.h.s16 %v2474
    %v2533 = vunpack.i.h.s16 %v2478
    %v2534 = vunpack.i.l.s16 %v2481
    %v2535 = vunpack.i.h.s16 %v2481
    %v2536 = vunpack.i.l.s16 %v2484
    %v2537 = vunpack.i.h.s16 %v2484
    %v2538 = vunpack.i.h.s16 %v2487
    %v2539 = vunpack.i.l.s16 %v2489
    %v2540 = vunpack.i.h.s16 %v2489
    %v2541 = vunpack.i.l.s16 %v2491
    %v2542 = vunpack.i.h.s16 %v2491
    %v2543 = vunpack.i.h.s16 %v2494
    %v2544 = vunpack.i.l.s16 %v2496
    %v2545 = vunpack.i.h.s16 %v2496
    %v2546 = vunpack.i.l.s16 %v2498
    %v2547 = vunpack.i.h.s16 %v2498
    %v2548 = vunpack.i.h.s16 %v2501
    %v2549 = vunpack.i.l.s16 %v2503
    %v2550 = vunpack.i.h.s16 %v2503
    %v2551 = vunpack.i.l.s16 %v2505
    %v2552 = vunpack.i.h.s16 %v2505
    %v2553 = vunpack.i.h.s16 %v2508
    %v2554 = vunpack.i.l.s16 %v2510
    %v2555 = vunpack.i.h.s16 %v2510
    %v2556 = vunpack.i.l.s16 %v2512
    %v2557 = vunpack.i.h.s16 %v2512
    %v2558 = vunpack.i.h.s16 %v2515
    %v2559 = vunpack.i.l.s16 %v2517
    %v2560 = vunpack.i.h.s16 %v2517
    %v2561 = vunpack.i.l.s16 %v2519
    %v2562 = vunpack.i.h.s16 %v2519
    %v2563 = vunpack.i.h.s16 %v2522
    %v2564 = vunpack.i.l.s16 %v2524
    %v2565 = vunpack.i.h.s16 %v2524
    %v2566 = vunpack.i.l.s16 %v2526
    %v2567 = vunpack.i.h.s16 %v2526
    %v2568 = vpack.i.b16 %v2529, %v2528
    %v2569 = vpack.i.b16 %v2531, %v2530
    %v2570 = vpack.i.b16 %v2533, %v2532
    %v2571 = vpack.i.b16 %v2535, %v2534
    %v2572 = vpack.i.b16 %v2537, %v2536
    %v2573 = vpack.i.b16 %v2539, %v2538
    %v2574 = vpack.i.b16 %v2541, %v2540
    %v2575 = vpack.i.b16 %v2543, %v2542
    %v2576 = vpack.i.b16 %v2545, %v2544
    %v2577 = vpack.i.b16 %v2547, %v2546
    %v2578 = vpack.i.b16 %v2549, %v2548
    %v2579 = vpack.i.b16 %v2551, %v2550
    %v2580 = vpack.i.b16 %v2553, %v2552
    %v2581 = vpack.i.b16 %v2555, %v2554
    %v2582 = vpack.i.b16 %v2557, %v2556
    %v2583 = vpack.i.b16 %v2559, %v2558
    %v2584 = vpack.i.b16 %v2561, %v2560
    %v2585 = vpack.i.b16 %v2563, %v2562
    %v2586 = vpack.i.b16 %v2565, %v2564
    %v2587 = vpack.i.b16 %v2567, %v2566
    %2589 = vst [vmem:[#allocation1] ss:$9 sm:$0xff] %v2568
    %s2591 = scalar_lea.vmem [#allocation1], 1
    %2592 = vst [vmem:[%s2591] ss:$9 sm:$0xff] %v2569
    %s2594 = scalar_lea.vmem [#allocation1], 2
    %2595 = vst [vmem:[%s2594] ss:$9 sm:$0xff] %v2570
    %s2597 = scalar_lea.vmem [#allocation1], 3
    %2598 = vst [vmem:[%s2597] ss:$9 sm:$0xff] %v2571
    %s2600 = scalar_lea.vmem [#allocation1], 4
    %2601 = vst [vmem:[%s2600] ss:$9 sm:$0xff] %v2572
    %s2603 = scalar_lea.vmem [#allocation1], 5
    %2604 = vst [vmem:[%s2603] ss:$9 sm:$0xff] %v2573
    %s2606 = scalar_lea.vmem [#allocation1], 6
    %2607 = vst [vmem:[%s2606] ss:$9 sm:$0xff] %v2574
    %s2609 = scalar_lea.vmem [#allocation1], 7
    %2610 = vst [vmem:[%s2609] ss:$9 sm:$0xff] %v2575
    %v2611 = vld [vmem:[#allocation1] sm:$0xff]
    %2613 = vst [vmem:[#allocation1] ss:$9 sm:$0xff] %v2576
    %2615 = vst [vmem:[%s2591] ss:$9 sm:$0xff] %v2577
    %2617 = vst [vmem:[%s2594] ss:$9 sm:$0xff] %v2578
    %2619 = vst [vmem:[%s2597] ss:$9 sm:$0xff] %v2579
    %2621 = vst [vmem:[%s2600] ss:$9 sm:$0xff] %v2580
    %2623 = vst [vmem:[%s2603] ss:$9 sm:$0xff] %v2581
    %2625 = vst [vmem:[%s2606] ss:$9 sm:$0xff] %v2582
    %2627 = vst [vmem:[%s2609] ss:$9 sm:$0xff] %v2583
    %v2628 = vld [vmem:[#allocation1] sm:$0xff]
    %2630 = vst [vmem:[#allocation1] ss:$9 sm:$0xff] %v2584
    %2632 = vst [vmem:[%s2591] ss:$9 sm:$0xff] %v2585
    %2634 = vst [vmem:[%s2594] ss:$9 sm:$0xff] %v2586
    %2636 = vst [vmem:[%s2597] ss:$9 sm:$0xff] %v2587
    %v2637 = vld [vmem:[#allocation1] sm:$0xff]
    %v2657 = vunpack.c.l.b16 %v2450
    %v2658 = vunpack.c.l.b16 %v2451
    %v2659 = vunpack.c.l.b16 %v2452
    %v2660 = vunpack.c.l.b16 %v2453
    %v2661 = vunpack.c.l.b16 %v2454
    %v2662 = vunpack.c.l.b16 %v2455
    %v2663 = vunpack.c.l.b16 %v2456
    %v2664 = vunpack.c.l.b16 %v2457
    %v2665 = vunpack.c.l.b16 %v2458
    %v2666 = vunpack.c.l.b16 %v2459
    %v2667 = vunpack.c.l.b16 %v2460
    %v2668 = vunpack.c.l.b16 %v2461
    %v2669 = vunpack.c.l.b16 %v2462
    %v2670 = vunpack.c.l.b16 %v2463
    %v2671 = vunpack.c.l.b16 %v2464
    %v2672 = vunpack.c.l.b16 %v2465
    %v2673 = vpack.c.b16 %v2658, %v2657
    %v2674 = vpack.c.b16 %v2660, %v2659
    %v2675 = vpack.c.b16 %v2662, %v2661
    %v2676 = vpack.c.b16 %v2664, %v2663
    %v2677 = vpack.c.b16 %v2666, %v2665
    %v2678 = vpack.c.b16 %v2668, %v2667
    %v2679 = vpack.c.b16 %v2670, %v2669
    %v2680 = vpack.c.b16 %v2672, %v2671
    %2689 = vmatpush.bf16.msra.mxu0 %v2680
    %2690 = vmatpush.bf16.msra.mxu0 %v2679
    %2691 = vmatpush.bf16.msra.mxu0 %v2678
    %2692 = vmatpush.bf16.msra.mxu0 %v2677
    %2693 = vmatpush.bf16.msra.mxu0 %v2676
    %2694 = vmatpush.bf16.msra.mxu0 %v2675
    %2695 = vmatpush.bf16.msra.mxu0 %v2674
    %2696 = vmatpush.bf16.msra.mxu0 %v2673
    %2697 = vmatmul.bf16.gmra.mxu0 %v2611
    %v2698 = vpop.f32.mrf.mxu0
    %v2699 = vadd.f32 0.0, %v2698
    %v2700 = vpop.f32.mrf.mxu0
    %v2701 = vadd.f32 0.0, %v2700
    %2702 = vmatmul.bf16.gmra.mxu0 %v2628
    %v2703 = vpop.f32.mrf.mxu0
    %v2704 = vadd.f32 0.0, %v2703
    %v2705 = vpop.f32.mrf.mxu0
    %v2706 = vadd.f32 0.0, %v2705
    %2707 = vmatmul.bf16.gmra.mxu0 %v2637
    %v2708 = vpop.f32.mrf.mxu0
    %v2709 = vadd.f32 0.0, %v2708
    %v2710 = vpop.f32.mrf.mxu0
    %2711 = vdwg.mxu0
    %v2717 = vrot.slane %v2699, 1
    %v2718 = vrot.slane %v2699, 2
    %v2719 = vrot.slane %v2699, 3
    %v2720 = vrot.slane %v2699, 4
    %v2721 = vrot.slane %v2699, 5
    %v2722 = vrot.slane %v2699, 6
    %v2723 = vrot.slane %v2699, 7
    %v2724 = vrot.slane %v2701, 1
    %v2725 = vrot.slane %v2701, 2
    %v2726 = vrot.slane %v2701, 3
    %v2727 = vrot.slane %v2701, 4
    %v2728 = vrot.slane %v2701, 5
    %v2729 = vrot.slane %v2701, 6
    %v2730 = vrot.slane %v2701, 7
    %v2731 = vrot.slane %v2704, 1
    %v2732 = vrot.slane %v2704, 2
    %v2733 = vrot.slane %v2704, 3
    %v2734 = vrot.slane %v2704, 4
    %v2735 = vrot.slane %v2704, 5
    %v2736 = vrot.slane %v2704, 6
    %v2737 = vrot.slane %v2704, 7
    %v2738 = vrot.slane %v2706, 1
    %v2739 = vrot.slane %v2706, 2
    %v2740 = vrot.slane %v2706, 3
    %v2741 = vrot.slane %v2706, 4
    %v2742 = vrot.slane %v2706, 5
    %v2743 = vrot.slane %v2706, 6
    %v2744 = vrot.slane %v2706, 7
    %v2745 = vrot.slane %v2709, 1
    %v2746 = vrot.slane %v2709, 2
    %v2747 = vrot.slane %v2709, 3
    %v2748 = vrot.slane %v2709, 4
    %v2749 = vrot.slane %v2709, 5
    %v2750 = vrot.slane %v2709, 6
    %v2751 = vrot.slane %v2709, 7
    %v2787 = vadd.f32 %v2409, %v2699
    %v2788 = vadd.f32 %v2410, %v2717
    %v2789 = vadd.f32 %v2411, %v2718
    %v2790 = vadd.f32 %v2412, %v2719
    %v2791 = vadd.f32 %v2413, %v2720
    %v2792 = vadd.f32 %v2414, %v2721
    %v2793 = vadd.f32 %v2415, %v2722
    %v2794 = vadd.f32 %v2416, %v2723
    %v2795 = vadd.f32 %v2417, %v2701
    %v2796 = vadd.f32 %v2418, %v2724
    %v2797 = vadd.f32 %v2419, %v2725
    %v2798 = vadd.f32 %v2420, %v2726
    %v2799 = vadd.f32 %v2421, %v2727
    %v2800 = vadd.f32 %v2422, %v2728
    %v2801 = vadd.f32 %v2423, %v2729
    %v2802 = vadd.f32 %v2424, %v2730
    %v2803 = vadd.f32 %v2425, %v2704
    %v2804 = vadd.f32 %v2426, %v2731
    %v2805 = vadd.f32 %v2427, %v2732
    %v2806 = vadd.f32 %v2428, %v2733
    %v2807 = vadd.f32 %v2429, %v2734
    %v2808 = vadd.f32 %v2430, %v2735
    %v2809 = vadd.f32 %v2431, %v2736
    %v2810 = vadd.f32 %v2432, %v2737
    %v2811 = vadd.f32 %v2433, %v2706
    %v2812 = vadd.f32 %v2434, %v2738
    %v2813 = vadd.f32 %v2435, %v2739
    %v2814 = vadd.f32 %v2436, %v2740
    %v2815 = vadd.f32 %v2437, %v2741
    %v2816 = vadd.f32 %v2438, %v2742
    %v2817 = vadd.f32 %v2439, %v2743
    %v2818 = vadd.f32 %v2440, %v2744
    %v2819 = vadd.f32 %v2441, %v2709
    %v2820 = vadd.f32 %v2442, %v2745
    %v2821 = vadd.f32 %v2443, %v2746
    %v2822 = vadd.f32 %v2444, %v2747
    %v2823 = vadd.f32 %v2445, %v2748
    %v2824 = vadd.f32 %v2446, %v2749
    %v2825 = vadd.f32 %v2447, %v2750
    %v2826 = vadd.f32 %v2448, %v2751
    %2867 = vst [vmem:[#allocation1] ss:$9 sm:$0xff] %v2787
    %s2868 = scalar_lea.vmem [#allocation1], 1
    %2869 = vst [vmem:[%s2868] ss:$9 sm:$0xff] %v2788
    %s2870 = scalar_lea.vmem [#allocation1], 2
    %2871 = vst [vmem:[%s2870] ss:$9 sm:$0xff] %v2789
    %s2872 = scalar_lea.vmem [#allocation1], 3
    %2873 = vst [vmem:[%s2872] ss:$9 sm:$0xff] %v2790
    %s2874 = scalar_lea.vmem [#allocation1], 4
    %2875 = vst [vmem:[%s2874] ss:$9 sm:$0xff] %v2791
    %v2876 = vld [vmem:[#allocation1] sm:$0xff]
    %2877 = vst [vmem:[#allocation1] ss:$9 sm:$0xff] %v2792
    %2878 = vst [vmem:[%s2868] ss:$9 sm:$0xff] %v2793
    %2879 = vst [vmem:[%s2870] ss:$9 sm:$0xff] %v2794
    %2880 = vst [vmem:[%s2872] ss:$9 sm:$0xff] %v2795
    %2881 = vst [vmem:[%s2874] ss:$9 sm:$0xff] %v2796
    %v2882 = vld [vmem:[#allocation1] sm:$0xff]
    %2883 = vst [vmem:[#allocation1] ss:$9 sm:$0xff] %v2797
    %2884 = vst [vmem:[%s2868] ss:$9 sm:$0xff] %v2798
    %2885 = vst [vmem:[%s2870] ss:$9 sm:$0xff] %v2799
    %2886 = vst [vmem:[%s2872] ss:$9 sm:$0xff] %v2800
    %2887 = vst [vmem:[%s2874] ss:$9 sm:$0xff] %v2801
    %v2888 = vld [vmem:[#allocation1] sm:$0xff]
    %2889 = vst [vmem:[#allocation1] ss:$9 sm:$0xff] %v2802
    %2890 = vst [vmem:[%s2868] ss:$9 sm:$0xff] %v2803
    %2891 = vst [vmem:[%s2870] ss:$9 sm:$0xff] %v2804
    %2892 = vst [vmem:[%s2872] ss:$9 sm:$0xff] %v2805
    %2893 = vst [vmem:[%s2874] ss:$9 sm:$0xff] %v2806
    %v2894 = vld [vmem:[#allocation1] sm:$0xff]
    %2895 = vst [vmem:[#allocation1] ss:$9 sm:$0xff] %v2807
    %2896 = vst [vmem:[%s2868] ss:$9 sm:$0xff] %v2808
    %2897 = vst [vmem:[%s2870] ss:$9 sm:$0xff] %v2809
    %2898 = vst [vmem:[%s2872] ss:$9 sm:$0xff] %v2810
    %2899 = vst [vmem:[%s2874] ss:$9 sm:$0xff] %v2811
    %v2900 = vld [vmem:[#allocation1] sm:$0xff]
    %2901 = vst [vmem:[#allocation1] ss:$9 sm:$0xff] %v2812
    %2902 = vst [vmem:[%s2868] ss:$9 sm:$0xff] %v2813
    %2903 = vst [vmem:[%s2870] ss:$9 sm:$0xff] %v2814
    %2904 = vst [vmem:[%s2872] ss:$9 sm:$0xff] %v2815
    %2905 = vst [vmem:[%s2874] ss:$9 sm:$0xff] %v2816
    %v2906 = vld [vmem:[#allocation1] sm:$0xff]
    %2907 = vst [vmem:[#allocation1] ss:$9 sm:$0xff] %v2817
    %2908 = vst [vmem:[%s2868] ss:$9 sm:$0xff] %v2818
    %2909 = vst [vmem:[%s2870] ss:$9 sm:$0xff] %v2819
    %2910 = vst [vmem:[%s2872] ss:$9 sm:$0xff] %v2820
    %2911 = vst [vmem:[%s2874] ss:$9 sm:$0xff] %v2821
    %v2912 = vld [vmem:[#allocation1] sm:$0xff]
    %2913 = vst [vmem:[#allocation1] ss:$9 sm:$0xff] %v2822
    %2914 = vst [vmem:[%s2868] ss:$9 sm:$0xff] %v2823
    %2915 = vst [vmem:[%s2870] ss:$9 sm:$0xff] %v2824
    %2916 = vst [vmem:[%s2872] ss:$9 sm:$0xff] %v2825
    %2917 = vst [vmem:[%s2874] ss:$9 sm:$0xff] %v2826
    %v2918 = vld [vmem:[#allocation1] sm:$0xff]
    %vm2927 = vcmask 1044480
    %v2928 = vsel %vm2927, %v2876, -inf
    %v2929 = vrot.slane %v2928, 4
    %v2930 = vmax.f32 %v2928, %v2929
    %v2931 = vrot.slane %v2930, 2
    %v2932 = vmax.f32 %v2930, %v2931
    %v2933 = vrot.slane %v2932, 1
    %v2934 = vmax.f32 %v2932, %v2933
    %v2935 = vsel %vm2927, %v2882, -inf
    %v2936 = vrot.slane %v2935, 4
    %v2937 = vmax.f32 %v2935, %v2936
    %v2938 = vrot.slane %v2937, 2
    %v2939 = vmax.f32 %v2937, %v2938
    %v2940 = vrot.slane %v2939, 1
    %v2941 = vmax.f32 %v2939, %v2940
    %v2942 = vsel %vm2927, %v2888, -inf
    %v2943 = vrot.slane %v2942, 4
    %v2944 = vmax.f32 %v2942, %v2943
    %v2945 = vrot.slane %v2944, 2
    %v2946 = vmax.f32 %v2944, %v2945
    %v2947 = vrot.slane %v2946, 1
    %v2948 = vmax.f32 %v2946, %v2947
    %v2949 = vsel %vm2927, %v2894, -inf
    %v2950 = vrot.slane %v2949, 4
    %v2951 = vmax.f32 %v2949, %v2950
    %v2952 = vrot.slane %v2951, 2
    %v2953 = vmax.f32 %v2951, %v2952
    %v2954 = vrot.slane %v2953, 1
    %v2955 = vmax.f32 %v2953, %v2954
    %v2956 = vsel %vm2927, %v2900, -inf
    %v2957 = vrot.slane %v2956, 4
    %v2958 = vmax.f32 %v2956, %v2957
    %v2959 = vrot.slane %v2958, 2
    %v2960 = vmax.f32 %v2958, %v2959
    %v2961 = vrot.slane %v2960, 1
    %v2962 = vmax.f32 %v2960, %v2961
    %v2963 = vsel %vm2927, %v2906, -inf
    %v2964 = vrot.slane %v2963, 4
    %v2965 = vmax.f32 %v2963, %v2964
    %v2966 = vrot.slane %v2965, 2
    %v2967 = vmax.f32 %v2965, %v2966
    %v2968 = vrot.slane %v2967, 1
    %v2969 = vmax.f32 %v2967, %v2968
    %v2970 = vsel %vm2927, %v2912, -inf
    %v2971 = vrot.slane %v2970, 4
    %v2972 = vmax.f32 %v2970, %v2971
    %v2973 = vrot.slane %v2972, 2
    %v2974 = vmax.f32 %v2972, %v2973
    %v2975 = vrot.slane %v2974, 1
    %v2976 = vmax.f32 %v2974, %v2975
    %v2977 = vsel %vm2927, %v2918, -inf
    %v2978 = vrot.slane %v2977, 4
    %v2979 = vmax.f32 %v2977, %v2978
    %v2980 = vrot.slane %v2979, 2
    %v2981 = vmax.f32 %v2979, %v2980
    %v2982 = vrot.slane %v2981, 1
    %v2983 = vmax.f32 %v2981, %v2982
    %v2984 = vperm.slane %v44, 2
    %v2985 = vadd.f32 %v2934, %v2984
    %v2986 = vadd.f32 %v2941, %v2984
    %v2987 = vadd.f32 %v2948, %v2984
    %v2988 = vadd.f32 %v2955, %v2984
    %v2989 = vadd.f32 %v2962, %v2984
    %v2990 = vadd.f32 %v2969, %v2984
    %v2991 = vadd.f32 %v2976, %v2984
    %v2992 = vadd.f32 %v2983, %v2984
    %v2993 = vmax.f32 %v2985, 0.0
    %v2994 = vmax.f32 %v2986, 0.0
    %v2995 = vmax.f32 %v2987, 0.0
    %v2996 = vmax.f32 %v2988, 0.0
    %v2997 = vmax.f32 %v2989, 0.0
    %v2998 = vmax.f32 %v2990, 0.0
    %v2999 = vmax.f32 %v2991, 0.0
    %v3000 = vmax.f32 %v2992, 0.0
    %v3001 = vpack.c.bf16 %v2993, %v2993
    %v3002 = vpack.c.bf16 %v2994, %v2994
    %v3003 = vpack.c.bf16 %v2995, %v2995
    %v3004 = vpack.c.bf16 %v2996, %v2996
    %v3005 = vpack.c.bf16 %v2997, %v2997
    %v3006 = vpack.c.bf16 %v2998, %v2998
    %v3007 = vpack.c.bf16 %v2999, %v2999
    %v3008 = vpack.c.bf16 %v3000, %v3000
    %v3017 = vunpack.c.l.b16 %v824
    %v3018 = vunpack.c.l.b16 %v825
    %v3019 = vunpack.c.l.b16 %v826
    %v3020 = vunpack.c.l.b16 %v827
    %v3021 = vunpack.c.l.b16 %v828
    %v3022 = vunpack.c.l.b16 %v829
    %v3023 = vunpack.c.l.b16 %v830
    %v3024 = vunpack.c.l.b16 %v831
    %v3025 = vpack.c.b16 %v3017, %v3017
    %v3026 = vpack.c.b16 %v3018, %v3018
    %v3027 = vpack.c.b16 %v3019, %v3019
    %v3028 = vpack.c.b16 %v3020, %v3020
    %v3029 = vpack.c.b16 %v3021, %v3021
    %v3030 = vpack.c.b16 %v3022, %v3022
    %v3031 = vpack.c.b16 %v3023, %v3023
    %v3032 = vpack.c.b16 %v3024, %v3024
    %v3033 = vunpack.c.l.b16 %v3025
    %v3034 = vunpack.c.l.b16 %v3026
    %v3035 = vunpack.c.l.b16 %v3027
    %v3036 = vunpack.c.l.b16 %v3028
    %v3037 = vunpack.c.l.b16 %v3029
    %v3038 = vunpack.c.l.b16 %v3030
    %v3039 = vunpack.c.l.b16 %v3031
    %v3040 = vunpack.c.l.b16 %v3032
    %v3041 = vrot.slane %v3034, 7
    %v3042 = vsel %vm99, %v3041, %v3033
    %v3043 = vrot.slane %v3035, 6
    %v3044 = vsel %vm103, %v3043, %v3042
    %v3045 = vrot.slane %v3036, 5
    %v3046 = vsel %vm107, %v3045, %v3044
    %v3047 = vrot.slane %v3037, 4
    %vm3048 = vcmask 1044484
    %v3049 = vsel %vm3048, %v3047, %v3046
    %v3050 = vrot.slane %v3038, 3
    %vm3051 = vcmask 1045509
    %v3052 = vsel %vm3051, %v3050, %v3049
    %v3053 = vrot.slane %v3039, 2
    %vm3054 = vcmask 1046534
    %v3055 = vsel %vm3054, %v3053, %v3052
    %v3056 = vrot.slane %v3040, 1
    %vm3057 = vcmask 1047559
    %v3058 = vsel %vm3057, %v3056, %v3055
    %v3059 = vpack.c.b16 %v3058, %v3058
    %v3069 = vunpack.c.l.b16 %v1730
    %v3070 = vunpack.c.l.b16 %v1731
    %v3071 = vunpack.c.l.b16 %v1732
    %v3072 = vunpack.c.l.b16 %v1733
    %v3073 = vunpack.c.l.b16 %v1734
    %v3074 = vunpack.c.l.b16 %v1735
    %v3075 = vunpack.c.l.b16 %v1736
    %v3076 = vunpack.c.l.b16 %v1737
    %v3077 = vpack.c.b16 %v3069, %v3069
    %v3078 = vpack.c.b16 %v3070, %v3070
    %v3079 = vpack.c.b16 %v3071, %v3071
    %v3080 = vpack.c.b16 %v3072, %v3072
    %v3081 = vpack.c.b16 %v3073, %v3073
    %v3082 = vpack.c.b16 %v3074, %v3074
    %v3083 = vpack.c.b16 %v3075, %v3075
    %v3084 = vpack.c.b16 %v3076, %v3076
    %v3085 = vunpack.c.l.b16 %v3077
    %v3086 = vunpack.c.l.b16 %v3078
    %v3087 = vunpack.c.l.b16 %v3079
    %v3088 = vunpack.c.l.b16 %v3080
    %v3089 = vunpack.c.l.b16 %v3081
    %v3090 = vunpack.c.l.b16 %v3082
    %v3091 = vunpack.c.l.b16 %v3083
    %v3092 = vunpack.c.l.b16 %v3084
    %v3093 = vrot.slane %v3086, 7
    %v3094 = vsel %vm99, %v3093, %v3085
    %v3095 = vrot.slane %v3087, 6
    %v3096 = vsel %vm103, %v3095, %v3094
    %v3097 = vrot.slane %v3088, 5
    %v3098 = vsel %vm107, %v3097, %v3096
    %v3099 = vrot.slane %v3089, 4
    %v3100 = vsel %vm3048, %v3099, %v3098
    %v3101 = vrot.slane %v3090, 3
    %v3102 = vsel %vm3051, %v3101, %v3100
    %v3103 = vrot.slane %v3091, 2
    %v3104 = vsel %vm3054, %v3103, %v3102
    %v3105 = vrot.slane %v3092, 1
    %v3106 = vsel %vm3057, %v3105, %v3104
    %v3107 = vpack.c.b16 %v3106, %v3106
    %v3117 = vunpack.c.l.b16 %v3001
    %v3118 = vunpack.c.l.b16 %v3002
    %v3119 = vunpack.c.l.b16 %v3003
    %v3120 = vunpack.c.l.b16 %v3004
    %v3121 = vunpack.c.l.b16 %v3005
    %v3122 = vunpack.c.l.b16 %v3006
    %v3123 = vunpack.c.l.b16 %v3007
    %v3124 = vunpack.c.l.b16 %v3008
    %v3125 = vpack.c.b16 %v3117, %v3117
    %v3126 = vpack.c.b16 %v3118, %v3118
    %v3127 = vpack.c.b16 %v3119, %v3119
    %v3128 = vpack.c.b16 %v3120, %v3120
    %v3129 = vpack.c.b16 %v3121, %v3121
    %v3130 = vpack.c.b16 %v3122, %v3122
    %v3131 = vpack.c.b16 %v3123, %v3123
    %v3132 = vpack.c.b16 %v3124, %v3124
    %v3133 = vunpack.c.l.b16 %v3125
    %v3134 = vunpack.c.l.b16 %v3126
    %v3135 = vunpack.c.l.b16 %v3127
    %v3136 = vunpack.c.l.b16 %v3128
    %v3137 = vunpack.c.l.b16 %v3129
    %v3138 = vunpack.c.l.b16 %v3130
    %v3139 = vunpack.c.l.b16 %v3131
    %v3140 = vunpack.c.l.b16 %v3132
    %v3141 = vrot.slane %v3134, 7
    %v3142 = vsel %vm99, %v3141, %v3133
    %v3143 = vrot.slane %v3135, 6
    %v3144 = vsel %vm103, %v3143, %v3142
    %v3145 = vrot.slane %v3136, 5
    %v3146 = vsel %vm107, %v3145, %v3144
    %v3147 = vrot.slane %v3137, 4
    %v3148 = vsel %vm3048, %v3147, %v3146
    %v3149 = vrot.slane %v3138, 3
    %v3150 = vsel %vm3051, %v3149, %v3148
    %v3151 = vrot.slane %v3139, 2
    %v3152 = vsel %vm3054, %v3151, %v3150
    %v3153 = vrot.slane %v3140, 1
    %v3154 = vsel %vm3057, %v3153, %v3152
    %v3155 = vpack.c.b16 %v3154, %v3154
    %v3157 = vld [vmem:[%s3] sm:$0xf]
    %v3158 = vld [vmem:[%s3 + $0x4] sm:$0xf]
    %v3159 = vld [vmem:[%s3 + $0x8] sm:$0xf]
    %v3160 = vld [vmem:[%s3 + $0xc] sm:$0xf]
    %v3161 = vld [vmem:[%s3 + $0x10] sm:$0xf]
    %v3162 = vld [vmem:[%s3 + $0x14] sm:$0xf]
    %v3163 = vld [vmem:[%s3 + $0x18] sm:$0xf]
    %v3164 = vld [vmem:[%s3 + $0x1c] sm:$0xf]
    %v3165 = vld [vmem:[%s3 + $0x20] sm:$0xf]
    %v3166 = vld [vmem:[%s3 + $0x24] sm:$0xf]
    %v3167 = vld [vmem:[%s3 + $0x28] sm:$0xf]
    %v3168 = vld [vmem:[%s3 + $0x2c] sm:$0xf]
    %v3169 = vld [vmem:[%s3 + $0x30] sm:$0xf]
    %v3170 = vld [vmem:[%s3 + $0x34] sm:$0xf]
    %v3171 = vld [vmem:[%s3 + $0x38] sm:$0xf]
    %v3172 = vld [vmem:[%s3 + $0x3c] sm:$0xf]
    %v3173 = vld [vmem:[%s3 + $0x40] sm:$0xf]
    %v3174 = vld [vmem:[%s3 + $0x44] sm:$0xf]
    %v3175 = vld [vmem:[%s3 + $0x48] sm:$0xf]
    %v3176 = vld [vmem:[%s3 + $0x4c] sm:$0xf]
    %v3177 = vld [vmem:[%s3 + $0x50] sm:$0xf]
    %v3178 = vld [vmem:[%s3 + $0x54] sm:$0xf]
    %v3179 = vld [vmem:[%s3 + $0x58] sm:$0xf]
    %v3180 = vld [vmem:[%s3 + $0x5c] sm:$0xf]
    %v3181 = vld [vmem:[%s3 + $0x60] sm:$0xf]
    %v3182 = vld [vmem:[%s3 + $0x64] sm:$0xf]
    %v3183 = vld [vmem:[%s3 + $0x68] sm:$0xf]
    %v3184 = vld [vmem:[%s3 + $0x6c] sm:$0xf]
    %v3185 = vld [vmem:[%s3 + $0x70] sm:$0xf]
    %v3186 = vld [vmem:[%s3 + $0x74] sm:$0xf]
    %v3187 = vld [vmem:[%s3 + $0x78] sm:$0xf]
    %v3188 = vld [vmem:[%s3 + $0x7c] sm:$0xf]
    %v3189 = vld [vmem:[%s3 + $0x80] sm:$0xf]
    %v3190 = vld [vmem:[%s3 + $0x84] sm:$0xf]
    %v3191 = vld [vmem:[%s3 + $0x88] sm:$0xf]
    %v3192 = vld [vmem:[%s3 + $0x8c] sm:$0xf]
    %v3193 = vld [vmem:[%s3 + $0x90] sm:$0xf]
    %v3194 = vld [vmem:[%s3 + $0x94] sm:$0xf]
    %v3195 = vld [vmem:[%s3 + $0x98] sm:$0xf]
    %v3196 = vld [vmem:[%s3 + $0x9c] sm:$0xf]
    %v3197 = vld [vmem:[%s3 + $0xa0] sm:$0xf]
    %v3198 = vld [vmem:[%s3 + $0xa4] sm:$0xf]
    %v3199 = vld [vmem:[%s3 + $0xa8] sm:$0xf]
    %v3200 = vld [vmem:[%s3 + $0xac] sm:$0xf]
    %v3201 = vld [vmem:[%s3 + $0xb0] sm:$0xf]
    %v3202 = vld [vmem:[%s3 + $0xb4] sm:$0xf]
    %v3203 = vld [vmem:[%s3 + $0xb8] sm:$0xf]
    %v3204 = vld [vmem:[%s3 + $0xbc] sm:$0xf]
    %v3205 = vld [vmem:[%s4] sm:$0x1]
    %v3207 = vperm.slane %v3205, 0
    %v3257 = vunpack.c.l.b16 %v3157
    %v3258 = vunpack.c.l.b16 %v3158
    %v3259 = vunpack.c.l.b16 %v3159
    %v3260 = vunpack.c.l.b16 %v3160
    %v3261 = vunpack.c.l.b16 %v3161
    %v3262 = vunpack.c.l.b16 %v3162
    %v3263 = vunpack.c.l.b16 %v3163
    %v3264 = vunpack.c.l.b16 %v3164
    %v3265 = vunpack.c.l.b16 %v3165
    %v3266 = vunpack.c.l.b16 %v3166
    %v3267 = vunpack.c.l.b16 %v3167
    %v3268 = vunpack.c.l.b16 %v3168
    %v3269 = vunpack.c.l.b16 %v3169
    %v3270 = vunpack.c.l.b16 %v3170
    %v3271 = vunpack.c.l.b16 %v3171
    %v3272 = vunpack.c.l.b16 %v3172
    %v3273 = vunpack.c.l.b16 %v3173
    %v3274 = vunpack.c.l.b16 %v3174
    %v3275 = vunpack.c.l.b16 %v3175
    %v3276 = vunpack.c.l.b16 %v3176
    %v3277 = vunpack.c.l.b16 %v3177
    %v3278 = vunpack.c.l.b16 %v3178
    %v3279 = vunpack.c.l.b16 %v3179
    %v3280 = vunpack.c.l.b16 %v3180
    %v3281 = vunpack.c.l.b16 %v3181
    %v3282 = vunpack.c.l.b16 %v3182
    %v3283 = vunpack.c.l.b16 %v3183
    %v3284 = vunpack.c.l.b16 %v3184
    %v3285 = vunpack.c.l.b16 %v3185
    %v3286 = vunpack.c.l.b16 %v3186
    %v3287 = vunpack.c.l.b16 %v3187
    %v3288 = vunpack.c.l.b16 %v3188
    %v3289 = vunpack.c.l.b16 %v3189
    %v3290 = vunpack.c.l.b16 %v3190
    %v3291 = vunpack.c.l.b16 %v3191
    %v3292 = vunpack.c.l.b16 %v3192
    %v3293 = vunpack.c.l.b16 %v3193
    %v3294 = vunpack.c.l.b16 %v3194
    %v3295 = vunpack.c.l.b16 %v3195
    %v3296 = vunpack.c.l.b16 %v3196
    %v3297 = vunpack.c.l.b16 %v3197
    %v3298 = vunpack.c.l.b16 %v3198
    %v3299 = vunpack.c.l.b16 %v3199
    %v3300 = vunpack.c.l.b16 %v3200
    %v3301 = vunpack.c.l.b16 %v3201
    %v3302 = vunpack.c.l.b16 %v3202
    %v3303 = vunpack.c.l.b16 %v3203
    %v3304 = vunpack.c.l.b16 %v3204
    %v3305 = vpack.c.b16 %v3258, %v3257
    %v3306 = vpack.c.b16 %v3260, %v3259
    %v3307 = vpack.c.b16 %v3262, %v3261
    %v3308 = vpack.c.b16 %v3264, %v3263
    %v3309 = vpack.c.b16 %v3266, %v3265
    %v3310 = vpack.c.b16 %v3268, %v3267
    %v3311 = vpack.c.b16 %v3270, %v3269
    %v3312 = vpack.c.b16 %v3272, %v3271
    %v3313 = vpack.c.b16 %v3274, %v3273
    %v3314 = vpack.c.b16 %v3276, %v3275
    %v3315 = vpack.c.b16 %v3278, %v3277
    %v3316 = vpack.c.b16 %v3280, %v3279
    %v3317 = vpack.c.b16 %v3282, %v3281
    %v3318 = vpack.c.b16 %v3284, %v3283
    %v3319 = vpack.c.b16 %v3286, %v3285
    %v3320 = vpack.c.b16 %v3288, %v3287
    %v3321 = vpack.c.b16 %v3290, %v3289
    %v3322 = vpack.c.b16 %v3292, %v3291
    %v3323 = vpack.c.b16 %v3294, %v3293
    %v3324 = vpack.c.b16 %v3296, %v3295
    %v3325 = vpack.c.b16 %v3298, %v3297
    %v3326 = vpack.c.b16 %v3300, %v3299
    %v3327 = vpack.c.b16 %v3302, %v3301
    %v3328 = vpack.c.b16 %v3304, %v3303
    %3353 = vmatpush.bf16.msra.mxu0 %v3312
    %3354 = vmatpush.bf16.msra.mxu0 %v3311
    %3355 = vmatpush.bf16.msra.mxu0 %v3310
    %3356 = vmatpush.bf16.msra.mxu0 %v3309
    %3357 = vmatpush.bf16.msra.mxu0 %v3308
    %3358 = vmatpush.bf16.msra.mxu0 %v3307
    %3359 = vmatpush.bf16.msra.mxu0 %v3306
    %3360 = vmatpush.bf16.msra.mxu0 %v3305
    %3361 = vmatmul.bf16.gmra.mxu0 %v3059
    %v3362 = vpop.f32.mrf.mxu0
    %v3363 = vadd.f32 %v3207, %v3362
    %v3364 = vpop.f32.mrf.mxu0
    %3365 = vdwg.mxu0
    %3366 = vmatpush.bf16.msra.mxu0 %v3320
    %3367 = vmatpush.bf16.msra.mxu0 %v3319
    %3368 = vmatpush.bf16.msra.mxu0 %v3318
    %3369 = vmatpush.bf16.msra.mxu0 %v3317
    %3370 = vmatpush.bf16.msra.mxu0 %v3316
    %3371 = vmatpush.bf16.msra.mxu0 %v3315
    %3372 = vmatpush.bf16.msra.mxu0 %v3314
    %3373 = vmatpush.bf16.msra.mxu0 %v3313
    %3374 = vmatmul.bf16.gmra.mxu0 %v3107
    %v3375 = vpop.f32.mrf.mxu0
    %v3376 = vadd.f32 %v3363, %v3375
    %v3377 = vpop.f32.mrf.mxu0
    %3378 = vdwg.mxu0
    %3379 = vmatpush.bf16.msra.mxu0 %v3328
    %3380 = vmatpush.bf16.msra.mxu0 %v3327
    %3381 = vmatpush.bf16.msra.mxu0 %v3326
    %3382 = vmatpush.bf16.msra.mxu0 %v3325
    %3383 = vmatpush.bf16.msra.mxu0 %v3324
    %3384 = vmatpush.bf16.msra.mxu0 %v3323
    %3385 = vmatpush.bf16.msra.mxu0 %v3322
    %3386 = vmatpush.bf16.msra.mxu0 %v3321
    %3387 = vmatmul.bf16.gmra.mxu0 %v3155
    %v3388 = vpop.f32.mrf.mxu0
    %v3389 = vadd.f32 %v3376, %v3388
    %v3390 = vpop.f32.mrf.mxu0
    %3391 = vdwg.mxu0
    %3392 = vst [vmem:[%s5] sm:$0xff] %v3389
    // Predicated region
    $region26: #{_forward.1} parent=1 // pred_check
      _
    $region27: #{_forward.1} parent=1 // pred_check_branch
      %3394 = sbr.rel (0) target = $region29
    $region28: #{_forward.1} parent=1 // pred_region
      _
    $region29: #{_forward.1} parent=1 // pred_fallthru
      _
    // Predicated region
    $region30: #{_forward.1} parent=1 // pred_check
      _
    $region31: #{_forward.1} parent=1 // pred_check_branch
      %3396 = sbr.rel (0) target = $region33
    $region32: #{_forward.1} parent=1 // pred_region
      _
    $region33: #{_forward.1} parent=1 // pred_fallthru
      _
    %3397 = vsyncpa [#allocation3], 1

</llo_original>
